<compile_context>
chip_gen: v7x
topology: tpu7x:2x2x1
jax: 0.10.0
libtpu: 0.0.40
codegen_flags: <defaults>
</compile_context>

<pallas_src>
import numpy as np
import jax
import jax.numpy as jnp
from jax.experimental import pallas as pl
from jax.experimental.pallas import tpu as pltpu  # noqa: F401  (TPU backend)

# ----------------------------------------------------------------------------
# Config (mirrors cfg.FRAME / cfg.GRU of the PyTorch module, small shapes)
# ----------------------------------------------------------------------------
BATCH = 2
T_VIS = 16                 # raw visual frames
FRAME_INPUT_SIZE = 32
FRAME_HIDDEN_SIZE = 32
FRAME_KERNEL_SIZE = 2
FRAME_STRIDE = 2
FRAME_NUM_CLIPS = 8        # (T_VIS - K)//S + 1
FRAME_USE_POSITION = True

T_TXT = 8
GRU_VIS_INPUT_SIZE = FRAME_HIDDEN_SIZE
GRU_VIS_HIDDEN_SIZE = 32
GRU_TXT_INPUT_SIZE = 32
GRU_TXT_HIDDEN_SIZE = 32
GRU_NUM_LAYERS = 1         # TODO(synk): NUM_LAYERS>1 would stack bigru() calls
GRU_BIDIRECTIONAL = True


# ----------------------------------------------------------------------------
# Kernel 1: FrameAvgPool (+ LearnPositionalEncoding), whole batch in one call.
#   Conv1d(k=1) == pointwise matmul over the flattened (B*T, C) rows;
#   AvgPool1d expressed as a (NC, T) matmul (general in kernel/stride);
#   positional embedding added in-kernel.  Dropout(p=0.1) is eval-mode identity.
# ----------------------------------------------------------------------------
def _frame_encoder_kernel(x_ref, wt_ref, b_ref, pool_ref, pos_ref, out_ref):
    # x_ref: (B*T, C) batch-major   wt_ref: (C, H)   b_ref: (1, H)
    # pool_ref: (NC, T)             pos_ref: (NC, H) out_ref: (B, NC, H)
    B = out_ref.shape[0]
    T = x_ref.shape[0] // B
    # Conv1d(kernel=1) + ReLU for the whole batch: one MXU matmul.
    y = jnp.maximum(
        jnp.dot(x_ref[...], wt_ref[...], preferred_element_type=jnp.float32)
        + b_ref[...], 0.0)                                        # (B*T, H)
    # AvgPool1d as a (NC, T) matmul per batch (static unroll, B is tiny).
    for b in range(B):
        yb = y[b * T:(b + 1) * T, :]                              # aligned static slice
        out_ref[b] = (jnp.dot(pool_ref[...], yb,
                              preferred_element_type=jnp.float32)
                      + pos_ref[...])


def frame_encoder(x, conv_w, conv_b, pos_embed, kernel_size, stride):
    """x: (B, T, C) float32 -> (B, NC, H) float32."""
    B, T, C = x.shape
    H = conv_w.shape[0]
    NC = (T - kernel_size) // stride + 1
    assert pos_embed.shape == (NC, H)

    # AvgPool1d as a constant (NC, T) averaging matrix (handles any k/stride).
    pool_np = np.zeros((NC, T), np.float32)
    for j in range(NC):
        pool_np[j, j * stride: j * stride + kernel_size] = 1.0 / kernel_size
    pool = jnp.asarray(pool_np)

    wt = conv_w.reshape(H, C).T              # (C, H): Conv1d weight, k=1 squeezed
    bias = conv_b.reshape(1, H)
    x_flat = x.reshape(B * T, C)             # free row-major collapse (XLA side)

    return pl.pallas_call(
        _frame_encoder_kernel,
        out_shape=jax.ShapeDtypeStruct((B, NC, H), jnp.float32),
    )(x_flat, wt, bias, pool, pos_embed)


# ----------------------------------------------------------------------------
# Kernel 2: fused bidirectional GRU (single layer), one gridless pallas_call.
#   - gi = x @ [W_ih_f^T | W_ih_b^T] (+ folded biases) for ALL timesteps: 1 matmul.
#   - per sequential step: gh = [h_f|h_b] @ blockdiag(W_hh_f^T, W_hh_b^T) (+ b_hh_n),
#     then PyTorch (r, z, n) gate math for both directions.
#   - static unrolled time loop (T is small); output written once, lane-dense.
# ----------------------------------------------------------------------------
def _bigru_kernel(x_ref, wih_ref, whh_ref, bgi_ref, bhn_ref, out_ref):
    # x_ref:   (T*B, I)   time-major flat input (row = t*B + b)
    # wih_ref: (I, 6Hd)   [W_ih_fwd^T | W_ih_bwd^T]
    # whh_ref: (2Hd, 6Hd) block-diag [W_hh_fwd^T, 0; 0, W_hh_bwd^T]
    # bgi_ref: (1, 6Hd)   b_ih with b_hh pre-summed into the r/z gate slices
    # bhn_ref: (1, 6Hd)   b_hh of the n gate only (zeros elsewhere)
    # out_ref: (T, B, 2Hd)  [forward | backward] hidden state per timestep
    T, B, H2 = out_ref.shape
    Hd = H2 // 2

    # Hoisted input projection: every timestep, both directions, one MXU op.
    gi = jnp.dot(x_ref[...], wih_ref[...],
                 preferred_element_type=jnp.float32) + bgi_ref[...]   # (T*B, 6Hd)

    h = jnp.zeros((B, 2 * Hd), jnp.float32)        # [h_fwd | h_bwd]
    outs_f = [None] * T
    outs_b = [None] * T
    # The recurrence is inherently sequential; unroll it statically so each step
    # is only one small matmul + VPU/EUP gate math on VMEM/vreg-resident data.
    for t in range(T):
        tb = T - 1 - t                             # backward-direction time index
        gh = jnp.dot(h, whh_ref[...],
                     preferred_element_type=jnp.float32) + bhn_ref[...]   # (B, 6Hd)
        gf = gi[t * B:(t + 1) * B, :]              # forward gates at time t
        gb = gi[tb * B:(tb + 1) * B, :]            # backward gates at time T-1-t
        h_f = h[:, 0:Hd]
        h_b = h[:, Hd:2 * Hd]
        # PyTorch gate order (r, z, n); biases already folded as described above.
        r_f = jax.nn.sigmoid(gf[:, 0:Hd] + gh[:, 0:Hd])
        z_f = jax.nn.sigmoid(gf[:, Hd:2 * Hd] + gh[:, Hd:2 * Hd])
        n_f = jnp.tanh(gf[:, 2 * Hd:3 * Hd] + r_f * gh[:, 2 * Hd:3 * Hd])
        h_f = (1.0 - z_f) * n_f + z_f * h_f
        r_b = jax.nn.sigmoid(gb[:, 3 * Hd:4 * Hd] + gh[:, 3 * Hd:4 * Hd])
        z_b = jax.nn.sigmoid(gb[:, 4 * Hd:5 * Hd] + gh[:, 4 * Hd:5 * Hd])
        n_b = jnp.tanh(gb[:, 5 * Hd:6 * Hd] + r_b * gh[:, 5 * Hd:6 * Hd])
        h_b = (1.0 - z_b) * n_b + z_b * h_b
        h = jnp.concatenate([h_f, h_b], axis=-1)
        outs_f[t] = h_f
        outs_b[tb] = h_b
    # Single lane-dense write of the whole (T, B, 2Hd) slab.
    out_ref[...] = jnp.stack(
        [jnp.concatenate([outs_f[t], outs_b[t]], axis=-1) for t in range(T)],
        axis=0)


def bigru(x, p):
    """Single-layer bidirectional GRU, batch_first.  x: (B, T, I) -> (B, T, 2*Hd)."""
    B, T, I = x.shape
    Hd = p["whh_f"].shape[1]

    # Host-side weight packing (tiny, once per call, outside the recurrence).
    # PyTorch layouts: wih (3Hd, I), whh (3Hd, Hd), gate row order (r, z, n).
    wih_cat = jnp.concatenate([p["wih_f"].T, p["wih_b"].T], axis=1)      # (I, 6Hd)
    z_blk = jnp.zeros((Hd, 3 * Hd), jnp.float32)
    whh_bd = jnp.concatenate(
        [jnp.concatenate([p["whh_f"].T, z_blk], axis=1),
         jnp.concatenate([z_blk, p["whh_b"].T], axis=1)], axis=0)        # (2Hd, 6Hd)

    def fold_rz(bih, bhh):   # r/z gates always see bih+bhh; n keeps bih only
        return jnp.concatenate([bih[:2 * Hd] + bhh[:2 * Hd], bih[2 * Hd:]], axis=0)

    def n_only(bhh):         # n-gate b_hh must stay inside r * (...) in the loop
        return jnp.concatenate(
            [jnp.zeros((2 * Hd,), jnp.float32), bhh[2 * Hd:]], axis=0)

    bgi = jnp.concatenate([fold_rz(p["bih_f"], p["bhh_f"]),
                           fold_rz(p["bih_b"], p["bhh_b"])]).reshape(1, 6 * Hd)
    bhn = jnp.concatenate([n_only(p["bhh_f"]),
                           n_only(p["bhh_b"])]).reshape(1, 6 * Hd)

    x_flat = jnp.transpose(x, (1, 0, 2)).reshape(T * B, I)   # time-major flat

    out_tb = pl.pallas_call(
        _bigru_kernel,
        out_shape=jax.ShapeDtypeStruct((T, B, 2 * Hd), jnp.float32),
    )(x_flat, wih_cat, whh_bd, bgi, bhn)                      # (T, B, 2Hd)
    return jnp.transpose(out_tb, (1, 0, 2))                   # (B, T, 2Hd)


# ----------------------------------------------------------------------------
# FeatureEncoder.forward
# ----------------------------------------------------------------------------
def feature_encoder_forward(params, visual_input, textual_input, textual_mask):
    # PyTorch: visual_input.transpose(-1,-2) -> Conv1d -> ReLU -> AvgPool -> pos.
    # Our kernel works directly in (B, T, C): the Conv1d(k=1) transpose is folded
    # into the weight layout, so the math is identical.
    vis_h = frame_encoder(visual_input, params["conv_w"], params["conv_b"],
                          params["pos_embed"], FRAME_KERNEL_SIZE, FRAME_STRIDE)
    # TODO(synk): on v7x the independent vis/txt GRUs (or fwd/bwd halves) could be
    #             mapped to the two TensorCores via pl.core_map; 1 TC on v5e/v6e.
    # TODO(synk): the frame-encoder kernel could additionally emit vis_h @ W_ih to
    #             skip one (tiny) HBM round trip of vis_h into the vis GRU.
    vis_gru = bigru(vis_h, params["vis_gru"])            # (B, NC, VIS_HIDDEN)
    vis_out = jnp.transpose(vis_gru, (0, 2, 1))          # (B, VIS_HIDDEN, NC)
    # txt_encoder.flatten_parameters() is a no-op here.
    txt_gru = bigru(textual_input, params["txt_gru"])    # (B, T_txt, TXT_HIDDEN)
    txt_out = txt_gru * textual_mask                     # broadcast (B, T_txt, 1)
    return vis_out, txt_out


# ----------------------------------------------------------------------------
# Deterministic parameter init (mirrors PyTorch default init scales)
# ----------------------------------------------------------------------------
def init_params(key):
    ks = jax.random.split(key, 12)

    def u(k, shape, bound):
        return jax.random.uniform(k, shape, jnp.float32, -bound, bound)

    p = {}
    cb = 1.0 / np.sqrt(FRAME_INPUT_SIZE)                 # Conv1d bound (k=1)
    p["conv_w"] = u(ks[0], (FRAME_HIDDEN_SIZE, FRAME_INPUT_SIZE, 1), cb)
    p["conv_b"] = u(ks[1], (FRAME_HIDDEN_SIZE,), cb)
    p["pos_embed"] = jax.random.uniform(                 # nn.init.uniform_ -> U[0,1)
        ks[2], (FRAME_NUM_CLIPS, FRAME_HIDDEN_SIZE), jnp.float32, 0.0, 1.0)

    def gru_params(keys, in_size, hidden):
        hd = hidden // 2 if GRU_BIDIRECTIONAL else hidden
        gb = 1.0 / np.sqrt(hd)
        return {
            "wih_f": u(keys[0], (3 * hd, in_size), gb),
            "whh_f": u(keys[1], (3 * hd, hd), gb),
            "bih_f": u(keys[2], (3 * hd,), gb),
            "bhh_f": u(keys[3], (3 * hd,), gb),
            "wih_b": u(keys[4], (3 * hd, in_size), gb),
            "whh_b": u(keys[5], (3 * hd, hd), gb),
            "bih_b": u(keys[6], (3 * hd,), gb),
            "bhh_b": u(keys[7], (3 * hd,), gb),
        }

    p["vis_gru"] = gru_params(jax.random.split(ks[3], 8),
                              GRU_VIS_INPUT_SIZE, GRU_VIS_HIDDEN_SIZE)
    p["txt_gru"] = gru_params(jax.random.split(ks[4], 8),
                              GRU_TXT_INPUT_SIZE, GRU_TXT_HIDDEN_SIZE)
    return p


# ----------------------------------------------------------------------------
# Pure-JAX reference (same math, no Pallas) for a correctness check
# ----------------------------------------------------------------------------
def _ref_gru_dir(x, wih, whh, bih, bhh, reverse):
    B, T, _ = x.shape
    hd = whh.shape[1]
    h = jnp.zeros((B, hd), jnp.float32)
    order = range(T - 1, -1, -1) if reverse else range(T)
    outs = [None] * T
    for t in order:
        xt = x[:, t]
        gi = xt @ wih.T + bih
        gh = h @ whh.T + bhh
        r = jax.nn.sigmoid(gi[:, :hd] + gh[:, :hd])
        z = jax.nn.sigmoid(gi[:, hd:2 * hd] + gh[:, hd:2 * hd])
        n = jnp.tanh(gi[:, 2 * hd:] + r * gh[:, 2 * hd:])
        h = (1.0 - z) * n + z * h
        outs[t] = h
    return jnp.stack(outs, axis=1)


def _ref_bigru(x, pp):
    f = _ref_gru_dir(x, pp["wih_f"], pp["whh_f"], pp["bih_f"], pp["bhh_f"], False)
    b = _ref_gru_dir(x, pp["wih_b"], pp["whh_b"], pp["bih_b"], pp["bhh_b"], True)
    return jnp.concatenate([f, b], axis=-1)


def reference_forward(params, visual_input, textual_input, textual_mask):
    H = FRAME_HIDDEN_SIZE
    w = params["conv_w"].reshape(H, FRAME_INPUT_SIZE)
    y = jax.nn.relu(jnp.einsum("btc,hc->bth", visual_input, w) + params["conv_b"])
    K, S, NC = FRAME_KERNEL_SIZE, FRAME_STRIDE, FRAME_NUM_CLIPS
    pooled = jnp.stack([y[:, j * S:j * S + K, :].mean(axis=1) for j in range(NC)],
                       axis=1)
    vis_h = pooled + params["pos_embed"][None]
    vis_out = jnp.transpose(_ref_bigru(vis_h, params["vis_gru"]), (0, 2, 1))
    txt_out = _ref_bigru(textual_input, params["txt_gru"]) * textual_mask
    return vis_out, txt_out


if __name__ == "__main__":
    key = jax.random.PRNGKey(0)
    k_param, k_vis, k_txt = jax.random.split(key, 3)
    params = init_params(k_param)

    visual_input = jax.random.normal(k_vis, (BATCH, T_VIS, FRAME_INPUT_SIZE),
                                     jnp.float32)
    textual_input = jax.random.normal(k_txt, (BATCH, T_TXT, GRU_TXT_INPUT_SIZE),
                                      jnp.float32)
    mask_np = np.ones((BATCH, T_TXT, 1), np.float32)
    mask_np[1, 5:, 0] = 0.0                      # second sequence padded
    textual_mask = jnp.asarray(mask_np)

    vis_out, txt_out = jax.jit(feature_encoder_forward)(
        params, visual_input, textual_input, textual_mask)
    jax.block_until_ready((vis_out, txt_out))

    assert vis_out.shape == (BATCH, GRU_VIS_HIDDEN_SIZE, FRAME_NUM_CLIPS)
    assert txt_out.shape == (BATCH, T_TXT, GRU_TXT_HIDDEN_SIZE)

    ref_vis, ref_txt = reference_forward(params, visual_input, textual_input,
                                         textual_mask)
    # Tolerance covers possible f32-via-bf16 MXU precision differences between
    # the in-kernel matmuls and the XLA-default-precision reference matmuls.
    np.testing.assert_allclose(np.asarray(vis_out), np.asarray(ref_vis),
                               rtol=2e-2, atol=2e-2)
    np.testing.assert_allclose(np.asarray(txt_out), np.asarray(ref_txt),
                               rtol=2e-2, atol=2e-2)

    print("KERNEL_OK")
</pallas_src>

<mosaic_0001>
module attributes {stable_mosaic.version = 11 : i64} {
  func.func @_frame_encoder_kernel(%arg0: memref<32x32xf32, #tpu.memory_space<vmem>>, %arg1: memref<32x32xf32, #tpu.memory_space<vmem>>, %arg2: memref<1x32xf32, #tpu.memory_space<vmem>>, %arg3: memref<8x16xf32, #tpu.memory_space<vmem>>, %arg4: memref<8x32xf32, #tpu.memory_space<vmem>>, %arg5: memref<2x8x32xf32, #tpu.memory_space<vmem>>) attributes {dimension_semantics = [], scalar_prefetch = 0 : i64, scratch_operands = 0 : i64, tpu.core_type = #tpu.core_type<tc>} {
    %c0 = arith.constant 0 : index
    %c0_0 = arith.constant 0 : index
    %0 = vector.load %arg0[%c0, %c0_0] : memref<32x32xf32, #tpu.memory_space<vmem>>, vector<32x32xf32>
    %c0_1 = arith.constant 0 : index
    %c0_2 = arith.constant 0 : index
    %1 = vector.load %arg1[%c0_1, %c0_2] : memref<32x32xf32, #tpu.memory_space<vmem>>, vector<32x32xf32>
    %cst = arith.constant dense<0.000000e+00> : vector<32x32xf32>
    %2 = tpu.matmul %0, %1, %cst {dimension_numbers = #tpu.dot_dimension_numbers<[1], [0], [0], [1], [0, 0, 1, 1], [], []>} : vector<32x32xf32>, vector<32x32xf32>, vector<32x32xf32> -> vector<32x32xf32>
    %c0_3 = arith.constant 0 : index
    %c0_4 = arith.constant 0 : index
    %3 = vector.load %arg2[%c0_3, %c0_4] : memref<1x32xf32, #tpu.memory_space<vmem>>, vector<1x32xf32>
    %4 = vector.broadcast %3 : vector<1x32xf32> to vector<32x32xf32>
    %5 = arith.addf %2, %4 : vector<32x32xf32>
    %cst_5 = arith.constant 0.000000e+00 : f32
    %6 = vector.broadcast %cst_5 : f32 to vector<32x32xf32>
    %7 = arith.maximumf %5, %6 : vector<32x32xf32>
    %8 = vector.extract_strided_slice %7 {offsets = [0, 0], sizes = [16, 32], strides = [1, 1]} : vector<32x32xf32> to vector<16x32xf32>
    %c0_6 = arith.constant 0 : index
    %c0_7 = arith.constant 0 : index
    %9 = vector.load %arg3[%c0_6, %c0_7] : memref<8x16xf32, #tpu.memory_space<vmem>>, vector<8x16xf32>
    %cst_8 = arith.constant dense<0.000000e+00> : vector<8x32xf32>
    %10 = tpu.matmul %9, %8, %cst_8 {dimension_numbers = #tpu.dot_dimension_numbers<[1], [0], [0], [1], [0, 0, 1, 1], [], []>} : vector<8x16xf32>, vector<16x32xf32>, vector<8x32xf32> -> vector<8x32xf32>
    %c0_9 = arith.constant 0 : index
    %c0_10 = arith.constant 0 : index
    %11 = vector.load %arg4[%c0_9, %c0_10] : memref<8x32xf32, #tpu.memory_space<vmem>>, vector<8x32xf32>
    %12 = arith.addf %10, %11 : vector<8x32xf32>
    %c0_11 = arith.constant 0 : index
    %c0_12 = arith.constant 0 : index
    %c0_13 = arith.constant 0 : index
    %13 = vector.load %arg5[%c0_11, %c0_12, %c0_13] : memref<2x8x32xf32, #tpu.memory_space<vmem>>, vector<1x8x32xf32>
    %14 = vector.shape_cast %13 : vector<1x8x32xf32> to vector<8x32xf32>
    %15 = vector.shape_cast %12 : vector<8x32xf32> to vector<1x8x32xf32>
    tpu.vector_store %arg5[%c0_11, %c0_12, %c0_13], %15 {strides = array<i32>} : memref<2x8x32xf32, #tpu.memory_space<vmem>>, vector<1x8x32xf32>,
    %16 = vector.extract_strided_slice %7 {offsets = [16, 0], sizes = [16, 32], strides = [1, 1]} : vector<32x32xf32> to vector<16x32xf32>
    %c0_14 = arith.constant 0 : index
    %c0_15 = arith.constant 0 : index
    %17 = vector.load %arg3[%c0_14, %c0_15] : memref<8x16xf32, #tpu.memory_space<vmem>>, vector<8x16xf32>
    %cst_16 = arith.constant dense<0.000000e+00> : vector<8x32xf32>
    %18 = tpu.matmul %17, %16, %cst_16 {dimension_numbers = #tpu.dot_dimension_numbers<[1], [0], [0], [1], [0, 0, 1, 1], [], []>} : vector<8x16xf32>, vector<16x32xf32>, vector<8x32xf32> -> vector<8x32xf32>
    %c0_17 = arith.constant 0 : index
    %c0_18 = arith.constant 0 : index
    %19 = vector.load %arg4[%c0_17, %c0_18] : memref<8x32xf32, #tpu.memory_space<vmem>>, vector<8x32xf32>
    %20 = arith.addf %18, %19 : vector<8x32xf32>
    %c1 = arith.constant 1 : index
    %c0_19 = arith.constant 0 : index
    %c0_20 = arith.constant 0 : index
    %21 = vector.load %arg5[%c1, %c0_19, %c0_20] : memref<2x8x32xf32, #tpu.memory_space<vmem>>, vector<1x8x32xf32>
    %22 = vector.shape_cast %21 : vector<1x8x32xf32> to vector<8x32xf32>
    %23 = vector.shape_cast %20 : vector<8x32xf32> to vector<1x8x32xf32>
    tpu.vector_store %arg5[%c1, %c0_19, %c0_20], %23 {strides = array<i32>} : memref<2x8x32xf32, #tpu.memory_space<vmem>>, vector<1x8x32xf32>,
    return
  }
}

module attributes {stable_mosaic.version = 11 : i64} {
  func.func @_bigru_kernel(%arg0: memref<16x32xf32, #tpu.memory_space<vmem>>, %arg1: memref<32x96xf32, #tpu.memory_space<vmem>>, %arg2: memref<32x96xf32, #tpu.memory_space<vmem>>, %arg3: memref<1x96xf32, #tpu.memory_space<vmem>>, %arg4: memref<1x96xf32, #tpu.memory_space<vmem>>, %arg5: memref<8x2x32xf32, #tpu.memory_space<vmem>>) attributes {dimension_semantics = [], scalar_prefetch = 0 : i64, scratch_operands = 0 : i64, tpu.core_type = #tpu.core_type<tc>} {
    %c0 = arith.constant 0 : index
    %c0_0 = arith.constant 0 : index
    %0 = vector.load %arg0[%c0, %c0_0] : memref<16x32xf32, #tpu.memory_space<vmem>>, vector<16x32xf32>
    %c0_1 = arith.constant 0 : index
    %c0_2 = arith.constant 0 : index
    %1 = vector.load %arg1[%c0_1, %c0_2] : memref<32x96xf32, #tpu.memory_space<vmem>>, vector<32x96xf32>
    %cst = arith.constant dense<0.000000e+00> : vector<16x96xf32>
    %2 = tpu.matmul %0, %1, %cst {dimension_numbers = #tpu.dot_dimension_numbers<[1], [0], [0], [1], [0, 0, 1, 1], [], []>} : vector<16x32xf32>, vector<32x96xf32>, vector<16x96xf32> -> vector<16x96xf32>
    %c0_3 = arith.constant 0 : index
    %c0_4 = arith.constant 0 : index
    %3 = vector.load %arg3[%c0_3, %c0_4] : memref<1x96xf32, #tpu.memory_space<vmem>>, vector<1x96xf32>
    %4 = vector.broadcast %3 : vector<1x96xf32> to vector<16x96xf32>
    %5 = arith.addf %2, %4 : vector<16x96xf32>
    %cst_5 = arith.constant 0.000000e+00 : f32
    %6 = vector.broadcast %cst_5 : f32 to vector<2x32xf32>
    %c0_6 = arith.constant 0 : index
    %c0_7 = arith.constant 0 : index
    %7 = vector.load %arg2[%c0_6, %c0_7] : memref<32x96xf32, #tpu.memory_space<vmem>>, vector<32x96xf32>
    %cst_8 = arith.constant dense<0.000000e+00> : vector<2x96xf32>
    %8 = tpu.matmul %6, %7, %cst_8 {dimension_numbers = #tpu.dot_dimension_numbers<[1], [0], [0], [1], [0, 0, 1, 1], [], []>} : vector<2x32xf32>, vector<32x96xf32>, vector<2x96xf32> -> vector<2x96xf32>
    %c0_9 = arith.constant 0 : index
    %c0_10 = arith.constant 0 : index
    %9 = vector.load %arg4[%c0_9, %c0_10] : memref<1x96xf32, #tpu.memory_space<vmem>>, vector<1x96xf32>
    %10 = vector.broadcast %9 : vector<1x96xf32> to vector<2x96xf32>
    %11 = arith.addf %8, %10 : vector<2x96xf32>
    %12 = vector.extract_strided_slice %5 {offsets = [0, 0], sizes = [2, 96], strides = [1, 1]} : vector<16x96xf32> to vector<2x96xf32>
    %13 = vector.extract_strided_slice %5 {offsets = [14, 0], sizes = [2, 96], strides = [1, 1]} : vector<16x96xf32> to vector<2x96xf32>
    %14 = vector.extract_strided_slice %6 {offsets = [0, 0], sizes = [2, 16], strides = [1, 1]} : vector<2x32xf32> to vector<2x16xf32>
    %15 = vector.extract_strided_slice %6 {offsets = [0, 16], sizes = [2, 16], strides = [1, 1]} : vector<2x32xf32> to vector<2x16xf32>
    %16 = vector.extract_strided_slice %12 {offsets = [0, 0], sizes = [2, 16], strides = [1, 1]} : vector<2x96xf32> to vector<2x16xf32>
    %17 = vector.extract_strided_slice %11 {offsets = [0, 0], sizes = [2, 16], strides = [1, 1]} : vector<2x96xf32> to vector<2x16xf32>
    %18 = arith.addf %16, %17 : vector<2x16xf32>
    %19 = arith.negf %18 : vector<2x16xf32>
    %20 = math.exp %19 : vector<2x16xf32>
    %cst_11 = arith.constant 1.000000e+00 : f32
    %21 = vector.broadcast %cst_11 : f32 to vector<2x16xf32>
    %22 = arith.addf %21, %20 : vector<2x16xf32>
    %23 = arith.divf %21, %22 : vector<2x16xf32>
    %24 = vector.extract_strided_slice %12 {offsets = [0, 16], sizes = [2, 16], strides = [1, 1]} : vector<2x96xf32> to vector<2x16xf32>
    %25 = vector.extract_strided_slice %11 {offsets = [0, 16], sizes = [2, 16], strides = [1, 1]} : vector<2x96xf32> to vector<2x16xf32>
    %26 = arith.addf %24, %25 : vector<2x16xf32>
    %27 = arith.negf %26 : vector<2x16xf32>
    %28 = math.exp %27 : vector<2x16xf32>
    %cst_12 = arith.constant 1.000000e+00 : f32
    %29 = vector.broadcast %cst_12 : f32 to vector<2x16xf32>
    %30 = arith.addf %29, %28 : vector<2x16xf32>
    %31 = arith.divf %29, %30 : vector<2x16xf32>
    %32 = vector.extract_strided_slice %12 {offsets = [0, 32], sizes = [2, 16], strides = [1, 1]} : vector<2x96xf32> to vector<2x16xf32>
    %33 = vector.extract_strided_slice %11 {offsets = [0, 32], sizes = [2, 16], strides = [1, 1]} : vector<2x96xf32> to vector<2x16xf32>
    %34 = arith.mulf %23, %33 : vector<2x16xf32>
    %35 = arith.addf %32, %34 : vector<2x16xf32>
    %36 = math.tanh %35 : vector<2x16xf32>
    %cst_13 = arith.constant 1.000000e+00 : f32
    %37 = vector.broadcast %cst_13 : f32 to vector<2x16xf32>
    %38 = arith.subf %37, %31 : vector<2x16xf32>
    %39 = arith.mulf %38, %36 : vector<2x16xf32>
    %40 = arith.mulf %31, %14 : vector<2x16xf32>
    %41 = arith.addf %39, %40 : vector<2x16xf32>
    %42 = vector.extract_strided_slice %13 {offsets = [0, 48], sizes = [2, 16], strides = [1, 1]} : vector<2x96xf32> to vector<2x16xf32>
    %43 = vector.extract_strided_slice %11 {offsets = [0, 48], sizes = [2, 16], strides = [1, 1]} : vector<2x96xf32> to vector<2x16xf32>
    %44 = arith.addf %42, %43 : vector<2x16xf32>
    %45 = arith.negf %44 : vector<2x16xf32>
    %46 = math.exp %45 : vector<2x16xf32>
    %cst_14 = arith.constant 1.000000e+00 : f32
    %47 = vector.broadcast %cst_14 : f32 to vector<2x16xf32>
    %48 = arith.addf %47, %46 : vector<2x16xf32>
    %49 = arith.divf %47, %48 : vector<2x16xf32>
    %50 = vector.extract_strided_slice %13 {offsets = [0, 64], sizes = [2, 16], strides = [1, 1]} : vector<2x96xf32> to vector<2x16xf32>
    %51 = vector.extract_strided_slice %11 {offsets = [0, 64], sizes = [2, 16], strides = [1, 1]} : vector<2x96xf32> to vector<2x16xf32>
    %52 = arith.addf %50, %51 : vector<2x16xf32>
    %53 = arith.negf %52 : vector<2x16xf32>
    %54 = math.exp %53 : vector<2x16xf32>
    %cst_15 = arith.constant 1.000000e+00 : f32
    %55 = vector.broadcast %cst_15 : f32 to vector<2x16xf32>
    %56 = arith.addf %55, %54 : vector<2x16xf32>
    %57 = arith.divf %55, %56 : vector<2x16xf32>
    %58 = vector.extract_strided_slice %13 {offsets = [0, 80], sizes = [2, 16], strides = [1, 1]} : vector<2x96xf32> to vector<2x16xf32>
    %59 = vector.extract_strided_slice %11 {offsets = [0, 80], sizes = [2, 16], strides = [1, 1]} : vector<2x96xf32> to vector<2x16xf32>
    %60 = arith.mulf %49, %59 : vector<2x16xf32>
    %61 = arith.addf %58, %60 : vector<2x16xf32>
    %62 = math.tanh %61 : vector<2x16xf32>
    %cst_16 = arith.constant 1.000000e+00 : f32
    %63 = vector.broadcast %cst_16 : f32 to vector<2x16xf32>
    %64 = arith.subf %63, %57 : vector<2x16xf32>
    %65 = arith.mulf %64, %62 : vector<2x16xf32>
    %66 = arith.mulf %57, %15 : vector<2x16xf32>
    %67 = arith.addf %65, %66 : vector<2x16xf32>
    %68 = tpu.concatenate %41, %67 in 1 : vector<2x16xf32>, vector<2x16xf32> -> vector<2x32xf32>
    %c0_17 = arith.constant 0 : index
    %c0_18 = arith.constant 0 : index
    %69 = vector.load %arg2[%c0_17, %c0_18] : memref<32x96xf32, #tpu.memory_space<vmem>>, vector<32x96xf32>
    %cst_19 = arith.constant dense<0.000000e+00> : vector<2x96xf32>
    %70 = tpu.matmul %68, %69, %cst_19 {dimension_numbers = #tpu.dot_dimension_numbers<[1], [0], [0], [1], [0, 0, 1, 1], [], []>} : vector<2x32xf32>, vector<32x96xf32>, vector<2x96xf32> -> vector<2x96xf32>
    %c0_20 = arith.constant 0 : index
    %c0_21 = arith.constant 0 : index
    %71 = vector.load %arg4[%c0_20, %c0_21] : memref<1x96xf32, #tpu.memory_space<vmem>>, vector<1x96xf32>
    %72 = vector.broadcast %71 : vector<1x96xf32> to vector<2x96xf32>
    %73 = arith.addf %70, %72 : vector<2x96xf32>
    %74 = vector.extract_strided_slice %5 {offsets = [2, 0], sizes = [2, 96], strides = [1, 1]} : vector<16x96xf32> to vector<2x96xf32>
    %75 = vector.extract_strided_slice %5 {offsets = [12, 0], sizes = [2, 96], strides = [1, 1]} : vector<16x96xf32> to vector<2x96xf32>
    %76 = vector.extract_strided_slice %68 {offsets = [0, 0], sizes = [2, 16], strides = [1, 1]} : vector<2x32xf32> to vector<2x16xf32>
    %77 = vector.extract_strided_slice %68 {offsets = [0, 16], sizes = [2, 16], strides = [1, 1]} : vector<2x32xf32> to vector<2x16xf32>
    %78 = vector.extract_strided_slice %74 {offsets = [0, 0], sizes = [2, 16], strides = [1, 1]} : vector<2x96xf32> to vector<2x16xf32>
    %79 = vector.extract_strided_slice %73 {offsets = [0, 0], sizes = [2, 16], strides = [1, 1]} : vector<2x96xf32> to vector<2x16xf32>
    %80 = arith.addf %78, %79 : vector<2x16xf32>
    %81 = arith.negf %80 : vector<2x16xf32>
    %82 = math.exp %81 : vector<2x16xf32>
    %cst_22 = arith.constant 1.000000e+00 : f32
    %83 = vector.broadcast %cst_22 : f32 to vector<2x16xf32>
    %84 = arith.addf %83, %82 : vector<2x16xf32>
    %85 = arith.divf %83, %84 : vector<2x16xf32>
    %86 = vector.extract_strided_slice %74 {offsets = [0, 16], sizes = [2, 16], strides = [1, 1]} : vector<2x96xf32> to vector<2x16xf32>
    %87 = vector.extract_strided_slice %73 {offsets = [0, 16], sizes = [2, 16], strides = [1, 1]} : vector<2x96xf32> to vector<2x16xf32>
    %88 = arith.addf %86, %87 : vector<2x16xf32>
    %89 = arith.negf %88 : vector<2x16xf32>
    %90 = math.exp %89 : vector<2x16xf32>
    %cst_23 = arith.constant 1.000000e+00 : f32
    %91 = vector.broadcast %cst_23 : f32 to vector<2x16xf32>
    %92 = arith.addf %91, %90 : vector<2x16xf32>
    %93 = arith.divf %91, %92 : vector<2x16xf32>
    %94 = vector.extract_strided_slice %74 {offsets = [0, 32], sizes = [2, 16], strides = [1, 1]} : vector<2x96xf32> to vector<2x16xf32>
    %95 = vector.extract_strided_slice %73 {offsets = [0, 32], sizes = [2, 16], strides = [1, 1]} : vector<2x96xf32> to vector<2x16xf32>
    %96 = arith.mulf %85, %95 : vector<2x16xf32>
    %97 = arith.addf %94, %96 : vector<2x16xf32>
    %98 = math.tanh %97 : vector<2x16xf32>
    %cst_24 = arith.constant 1.000000e+00 : f32
    %99 = vector.broadcast %cst_24 : f32 to vector<2x16xf32>
    %100 = arith.subf %99, %93 : vector<2x16xf32>
    %101 = arith.mulf %100, %98 : vector<2x16xf32>
    %102 = arith.mulf %93, %76 : vector<2x16xf32>
    %103 = arith.addf %101, %102 : vector<2x16xf32>
    %104 = vector.extract_strided_slice %75 {offsets = [0, 48], sizes = [2, 16], strides = [1, 1]} : vector<2x96xf32> to vector<2x16xf32>
    %105 = vector.extract_strided_slice %73 {offsets = [0, 48], sizes = [2, 16], strides = [1, 1]} : vector<2x96xf32> to vector<2x16xf32>
    %106 = arith.addf %104, %105 : vector<2x16xf32>
    %107 = arith.negf %106 : vector<2x16xf32>
    %108 = math.exp %107 : vector<2x16xf32>
    %cst_25 = arith.constant 1.000000e+00 : f32
    %109 = vector.broadcast %cst_25 : f32 to vector<2x16xf32>
    %110 = arith.addf %109, %108 : vector<2x16xf32>
    %111 = arith.divf %109, %110 : vector<2x16xf32>
    %112 = vector.extract_strided_slice %75 {offsets = [0, 64], sizes = [2, 16], strides = [1, 1]} : vector<2x96xf32> to vector<2x16xf32>
    %113 = vector.extract_strided_slice %73 {offsets = [0, 64], sizes = [2, 16], strides = [1, 1]} : vector<2x96xf32> to vector<2x16xf32>
    %114 = arith.addf %112, %113 : vector<2x16xf32>
    %115 = arith.negf %114 : vector<2x16xf32>
    %116 = math.exp %115 : vector<2x16xf32>
    %cst_26 = arith.constant 1.000000e+00 : f32
    %117 = vector.broadcast %cst_26 : f32 to vector<2x16xf32>
    %118 = arith.addf %117, %116 : vector<2x16xf32>
    %119 = arith.divf %117, %118 : vector<2x16xf32>
    %120 = vector.extract_strided_slice %75 {offsets = [0, 80], sizes = [2, 16], strides = [1, 1]} : vector<2x96xf32> to vector<2x16xf32>
    %121 = vector.extract_strided_slice %73 {offsets = [0, 80], sizes = [2, 16], strides = [1, 1]} : vector<2x96xf32> to vector<2x16xf32>
    %122 = arith.mulf %111, %121 : vector<2x16xf32>
    %123 = arith.addf %120, %122 : vector<2x16xf32>
    %124 = math.tanh %123 : vector<2x16xf32>
    %cst_27 = arith.constant 1.000000e+00 : f32
    %125 = vector.broadcast %cst_27 : f32 to vector<2x16xf32>
    %126 = arith.subf %125, %119 : vector<2x16xf32>
    %127 = arith.mulf %126, %124 : vector<2x16xf32>
    %128 = arith.mulf %119, %77 : vector<2x16xf32>
    %129 = arith.addf %127, %128 : vector<2x16xf32>
    %130 = tpu.concatenate %103, %129 in 1 : vector<2x16xf32>, vector<2x16xf32> -> vector<2x32xf32>
    %c0_28 = arith.constant 0 : index
    %c0_29 = arith.constant 0 : index
    %131 = vector.load %arg2[%c0_28, %c0_29] : memref<32x96xf32, #tpu.memory_space<vmem>>, vector<32x96xf32>
    %cst_30 = arith.constant dense<0.000000e+00> : vector<2x96xf32>
    %132 = tpu.matmul %130, %131, %cst_30 {dimension_numbers = #tpu.dot_dimension_numbers<[1], [0], [0], [1], [0, 0, 1, 1], [], []>} : vector<2x32xf32>, vector<32x96xf32>, vector<2x96xf32> -> vector<2x96xf32>
    %c0_31 = arith.constant 0 : index
    %c0_32 = arith.constant 0 : index
    %133 = vector.load %arg4[%c0_31, %c0_32] : memref<1x96xf32, #tpu.memory_space<vmem>>, vector<1x96xf32>
    %134 = vector.broadcast %133 : vector<1x96xf32> to vector<2x96xf32>
    %135 = arith.addf %132, %134 : vector<2x96xf32>
    %136 = vector.extract_strided_slice %5 {offsets = [4, 0], sizes = [2, 96], strides = [1, 1]} : vector<16x96xf32> to vector<2x96xf32>
    %137 = vector.extract_strided_slice %5 {offsets = [10, 0], sizes = [2, 96], strides = [1, 1]} : vector<16x96xf32> to vector<2x96xf32>
    %138 = vector.extract_strided_slice %130 {offsets = [0, 0], sizes = [2, 16], strides = [1, 1]} : vector<2x32xf32> to vector<2x16xf32>
    %139 = vector.extract_strided_slice %130 {offsets = [0, 16], sizes = [2, 16], strides = [1, 1]} : vector<2x32xf32> to vector<2x16xf32>
    %140 = vector.extract_strided_slice %136 {offsets = [0, 0], sizes = [2, 16], strides = [1, 1]} : vector<2x96xf32> to vector<2x16xf32>
    %141 = vector.extract_strided_slice %135 {offsets = [0, 0], sizes = [2, 16], strides = [1, 1]} : vector<2x96xf32> to vector<2x16xf32>
    %142 = arith.addf %140, %141 : vector<2x16xf32>
    %143 = arith.negf %142 : vector<2x16xf32>
    %144 = math.exp %143 : vector<2x16xf32>
    %cst_33 = arith.constant 1.000000e+00 : f32
    %145 = vector.broadcast %cst_33 : f32 to vector<2x16xf32>
    %146 = arith.addf %145, %144 : vector<2x16xf32>
    %147 = arith.divf %145, %146 : vector<2x16xf32>
    %148 = vector.extract_strided_slice %136 {offsets = [0, 16], sizes = [2, 16], strides = [1, 1]} : vector<2x96xf32> to vector<2x16xf32>
    %149 = vector.extract_strided_slice %135 {offsets = [0, 16], sizes = [2, 16], strides = [1, 1]} : vector<2x96xf32> to vector<2x16xf32>
    %150 = arith.addf %148, %149 : vector<2x16xf32>
    %151 = arith.negf %150 : vector<2x16xf32>
    %152 = math.exp %151 : vector<2x16xf32>
    %cst_34 = arith.constant 1.000000e+00 : f32
    %153 = vector.broadcast %cst_34 : f32 to vector<2x16xf32>
    %154 = arith.addf %153, %152 : vector<2x16xf32>
    %155 = arith.divf %153, %154 : vector<2x16xf32>
    %156 = vector.extract_strided_slice %136 {offsets = [0, 32], sizes = [2, 16], strides = [1, 1]} : vector<2x96xf32> to vector<2x16xf32>
    %157 = vector.extract_strided_slice %135 {offsets = [0, 32], sizes = [2, 16], strides = [1, 1]} : vector<2x96xf32> to vector<2x16xf32>
    %158 = arith.mulf %147, %157 : vector<2x16xf32>
    %159 = arith.addf %156, %158 : vector<2x16xf32>
    %160 = math.tanh %159 : vector<2x16xf32>
    %cst_35 = arith.constant 1.000000e+00 : f32
    %161 = vector.broadcast %cst_35 : f32 to vector<2x16xf32>
    %162 = arith.subf %161, %155 : vector<2x16xf32>
    %163 = arith.mulf %162, %160 : vector<2x16xf32>
    %164 = arith.mulf %155, %138 : vector<2x16xf32>
    %165 = arith.addf %163, %164 : vector<2x16xf32>
    %166 = vector.extract_strided_slice %137 {offsets = [0, 48], sizes = [2, 16], strides = [1, 1]} : vector<2x96xf32> to vector<2x16xf32>
    %167 = vector.extract_strided_slice %135 {offsets = [0, 48], sizes = [2, 16], strides = [1, 1]} : vector<2x96xf32> to vector<2x16xf32>
    %168 = arith.addf %166, %167 : vector<2x16xf32>
    %169 = arith.negf %168 : vector<2x16xf32>
    %170 = math.exp %169 : vector<2x16xf32>
    %cst_36 = arith.constant 1.000000e+00 : f32
    %171 = vector.broadcast %cst_36 : f32 to vector<2x16xf32>
    %172 = arith.addf %171, %170 : vector<2x16xf32>
    %173 = arith.divf %171, %172 : vector<2x16xf32>
    %174 = vector.extract_strided_slice %137 {offsets = [0, 64], sizes = [2, 16], strides = [1, 1]} : vector<2x96xf32> to vector<2x16xf32>
    %175 = vector.extract_strided_slice %135 {offsets = [0, 64], sizes = [2, 16], strides = [1, 1]} : vector<2x96xf32> to vector<2x16xf32>
    %176 = arith.addf %174, %175 : vector<2x16xf32>
    %177 = arith.negf %176 : vector<2x16xf32>
    %178 = math.exp %177 : vector<2x16xf32>
    %cst_37 = arith.constant 1.000000e+00 : f32
    %179 = vector.broadcast %cst_37 : f32 to vector<2x16xf32>
    %180 = arith.addf %179, %178 : vector<2x16xf32>
    %181 = arith.divf %179, %180 : vector<2x16xf32>
    %182 = vector.extract_strided_slice %137 {offsets = [0, 80], sizes = [2, 16], strides = [1, 1]} : vector<2x96xf32> to vector<2x16xf32>
    %183 = vector.extract_strided_slice %135 {offsets = [0, 80], sizes = [2, 16], strides = [1, 1]} : vector<2x96xf32> to vector<2x16xf32>
    %184 = arith.mulf %173, %183 : vector<2x16xf32>
    %185 = arith.addf %182, %184 : vector<2x16xf32>
    %186 = math.tanh %185 : vector<2x16xf32>
    %cst_38 = arith.constant 1.000000e+00 : f32
    %187 = vector.broadcast %cst_38 : f32 to vector<2x16xf32>
    %188 = arith.subf %187, %181 : vector<2x16xf32>
    %189 = arith.mulf %188, %186 : vector<2x16xf32>
    %190 = arith.mulf %181, %139 : vector<2x16xf32>
    %191 = arith.addf %189, %190 : vector<2x16xf32>
    %192 = tpu.concatenate %165, %191 in 1 : vector<2x16xf32>, vector<2x16xf32> -> vector<2x32xf32>
    %c0_39 = arith.constant 0 : index
    %c0_40 = arith.constant 0 : index
    %193 = vector.load %arg2[%c0_39, %c0_40] : memref<32x96xf32, #tpu.memory_space<vmem>>, vector<32x96xf32>
    %cst_41 = arith.constant dense<0.000000e+00> : vector<2x96xf32>
    %194 = tpu.matmul %192, %193, %cst_41 {dimension_numbers = #tpu.dot_dimension_numbers<[1], [0], [0], [1], [0, 0, 1, 1], [], []>} : vector<2x32xf32>, vector<32x96xf32>, vector<2x96xf32> -> vector<2x96xf32>
    %c0_42 = arith.constant 0 : index
    %c0_43 = arith.constant 0 : index
    %195 = vector.load %arg4[%c0_42, %c0_43] : memref<1x96xf32, #tpu.memory_space<vmem>>, vector<1x96xf32>
    %196 = vector.broadcast %195 : vector<1x96xf32> to vector<2x96xf32>
    %197 = arith.addf %194, %196 : vector<2x96xf32>
    %198 = vector.extract_strided_slice %5 {offsets = [6, 0], sizes = [2, 96], strides = [1, 1]} : vector<16x96xf32> to vector<2x96xf32>
    %199 = vector.extract_strided_slice %5 {offsets = [8, 0], sizes = [2, 96], strides = [1, 1]} : vector<16x96xf32> to vector<2x96xf32>
    %200 = vector.extract_strided_slice %192 {offsets = [0, 0], sizes = [2, 16], strides = [1, 1]} : vector<2x32xf32> to vector<2x16xf32>
    %201 = vector.extract_strided_slice %192 {offsets = [0, 16], sizes = [2, 16], strides = [1, 1]} : vector<2x32xf32> to vector<2x16xf32>
    %202 = vector.extract_strided_slice %198 {offsets = [0, 0], sizes = [2, 16], strides = [1, 1]} : vector<2x96xf32> to vector<2x16xf32>
    %203 = vector.extract_strided_slice %197 {offsets = [0, 0], sizes = [2, 16], strides = [1, 1]} : vector<2x96xf32> to vector<2x16xf32>
    %204 = arith.addf %202, %203 : vector<2x16xf32>
    %205 = arith.negf %204 : vector<2x16xf32>
    %206 = math.exp %205 : vector<2x16xf32>
    %cst_44 = arith.constant 1.000000e+00 : f32
    %207 = vector.broadcast %cst_44 : f32 to vector<2x16xf32>
    %208 = arith.addf %207, %206 : vector<2x16xf32>
    %209 = arith.divf %207, %208 : vector<2x16xf32>
    %210 = vector.extract_strided_slice %198 {offsets = [0, 16], sizes = [2, 16], strides = [1, 1]} : vector<2x96xf32> to vector<2x16xf32>
    %211 = vector.extract_strided_slice %197 {offsets = [0, 16], sizes = [2, 16], strides = [1, 1]} : vector<2x96xf32> to vector<2x16xf32>
    %212 = arith.addf %210, %211 : vector<2x16xf32>
    %213 = arith.negf %212 : vector<2x16xf32>
    %214 = math.exp %213 : vector<2x16xf32>
    %cst_45 = arith.constant 1.000000e+00 : f32
    %215 = vector.broadcast %cst_45 : f32 to vector<2x16xf32>
    %216 = arith.addf %215, %214 : vector<2x16xf32>
    %217 = arith.divf %215, %216 : vector<2x16xf32>
    %218 = vector.extract_strided_slice %198 {offsets = [0, 32], sizes = [2, 16], strides = [1, 1]} : vector<2x96xf32> to vector<2x16xf32>
    %219 = vector.extract_strided_slice %197 {offsets = [0, 32], sizes = [2, 16], strides = [1, 1]} : vector<2x96xf32> to vector<2x16xf32>
    %220 = arith.mulf %209, %219 : vector<2x16xf32>
    %221 = arith.addf %218, %220 : vector<2x16xf32>
    %222 = math.tanh %221 : vector<2x16xf32>
    %cst_46 = arith.constant 1.000000e+00 : f32
    %223 = vector.broadcast %cst_46 : f32 to vector<2x16xf32>
    %224 = arith.subf %223, %217 : vector<2x16xf32>
    %225 = arith.mulf %224, %222 : vector<2x16xf32>
    %226 = arith.mulf %217, %200 : vector<2x16xf32>
    %227 = arith.addf %225, %226 : vector<2x16xf32>
    %228 = vector.extract_strided_slice %199 {offsets = [0, 48], sizes = [2, 16], strides = [1, 1]} : vector<2x96xf32> to vector<2x16xf32>
    %229 = vector.extract_strided_slice %197 {offsets = [0, 48], sizes = [2, 16], strides = [1, 1]} : vector<2x96xf32> to vector<2x16xf32>
    %230 = arith.addf %228, %229 : vector<2x16xf32>
    %231 = arith.negf %230 : vector<2x16xf32>
    %232 = math.exp %231 : vector<2x16xf32>
    %cst_47 = arith.constant 1.000000e+00 : f32
    %233 = vector.broadcast %cst_47 : f32 to vector<2x16xf32>
    %234 = arith.addf %233, %232 : vector<2x16xf32>
    %235 = arith.divf %233, %234 : vector<2x16xf32>
    %236 = vector.extract_strided_slice %199 {offsets = [0, 64], sizes = [2, 16], strides = [1, 1]} : vector<2x96xf32> to vector<2x16xf32>
    %237 = vector.extract_strided_slice %197 {offsets = [0, 64], sizes = [2, 16], strides = [1, 1]} : vector<2x96xf32> to vector<2x16xf32>
    %238 = arith.addf %236, %237 : vector<2x16xf32>
    %239 = arith.negf %238 : vector<2x16xf32>
    %240 = math.exp %239 : vector<2x16xf32>
    %cst_48 = arith.constant 1.000000e+00 : f32
    %241 = vector.broadcast %cst_48 : f32 to vector<2x16xf32>
    %242 = arith.addf %241, %240 : vector<2x16xf32>
    %243 = arith.divf %241, %242 : vector<2x16xf32>
    %244 = vector.extract_strided_slice %199 {offsets = [0, 80], sizes = [2, 16], strides = [1, 1]} : vector<2x96xf32> to vector<2x16xf32>
    %245 = vector.extract_strided_slice %197 {offsets = [0, 80], sizes = [2, 16], strides = [1, 1]} : vector<2x96xf32> to vector<2x16xf32>
    %246 = arith.mulf %235, %245 : vector<2x16xf32>
    %247 = arith.addf %244, %246 : vector<2x16xf32>
    %248 = math.tanh %247 : vector<2x16xf32>
    %cst_49 = arith.constant 1.000000e+00 : f32
    %249 = vector.broadcast %cst_49 : f32 to vector<2x16xf32>
    %250 = arith.subf %249, %243 : vector<2x16xf32>
    %251 = arith.mulf %250, %248 : vector<2x16xf32>
    %252 = arith.mulf %243, %201 : vector<2x16xf32>
    %253 = arith.addf %251, %252 : vector<2x16xf32>
    %254 = tpu.concatenate %227, %253 in 1 : vector<2x16xf32>, vector<2x16xf32> -> vector<2x32xf32>
    %c0_50 = arith.constant 0 : index
    %c0_51 = arith.constant 0 : index
    %255 = vector.load %arg2[%c0_50, %c0_51] : memref<32x96xf32, #tpu.memory_space<vmem>>, vector<32x96xf32>
    %cst_52 = arith.constant dense<0.000000e+00> : vector<2x96xf32>
    %256 = tpu.matmul %254, %255, %cst_52 {dimension_numbers = #tpu.dot_dimension_numbers<[1], [0], [0], [1], [0, 0, 1, 1], [], []>} : vector<2x32xf32>, vector<32x96xf32>, vector<2x96xf32> -> vector<2x96xf32>
    %c0_53 = arith.constant 0 : index
    %c0_54 = arith.constant 0 : index
    %257 = vector.load %arg4[%c0_53, %c0_54] : memref<1x96xf32, #tpu.memory_space<vmem>>, vector<1x96xf32>
    %258 = vector.broadcast %257 : vector<1x96xf32> to vector<2x96xf32>
    %259 = arith.addf %256, %258 : vector<2x96xf32>
    %260 = vector.extract_strided_slice %5 {offsets = [8, 0], sizes = [2, 96], strides = [1, 1]} : vector<16x96xf32> to vector<2x96xf32>
    %261 = vector.extract_strided_slice %5 {offsets = [6, 0], sizes = [2, 96], strides = [1, 1]} : vector<16x96xf32> to vector<2x96xf32>
    %262 = vector.extract_strided_slice %254 {offsets = [0, 0], sizes = [2, 16], strides = [1, 1]} : vector<2x32xf32> to vector<2x16xf32>
    %263 = vector.extract_strided_slice %254 {offsets = [0, 16], sizes = [2, 16], strides = [1, 1]} : vector<2x32xf32> to vector<2x16xf32>
    %264 = vector.extract_strided_slice %260 {offsets = [0, 0], sizes = [2, 16], strides = [1, 1]} : vector<2x96xf32> to vector<2x16xf32>
    %265 = vector.extract_strided_slice %259 {offsets = [0, 0], sizes = [2, 16], strides = [1, 1]} : vector<2x96xf32> to vector<2x16xf32>
    %266 = arith.addf %264, %265 : vector<2x16xf32>
    %267 = arith.negf %266 : vector<2x16xf32>
    %268 = math.exp %267 : vector<2x16xf32>
    %cst_55 = arith.constant 1.000000e+00 : f32
    %269 = vector.broadcast %cst_55 : f32 to vector<2x16xf32>
    %270 = arith.addf %269, %268 : vector<2x16xf32>
    %271 = arith.divf %269, %270 : vector<2x16xf32>
    %272 = vector.extract_strided_slice %260 {offsets = [0, 16], sizes = [2, 16], strides = [1, 1]} : vector<2x96xf32> to vector<2x16xf32>
    %273 = vector.extract_strided_slice %259 {offsets = [0, 16], sizes = [2, 16], strides = [1, 1]} : vector<2x96xf32> to vector<2x16xf32>
    %274 = arith.addf %272, %273 : vector<2x16xf32>
    %275 = arith.negf %274 : vector<2x16xf32>
    %276 = math.exp %275 : vector<2x16xf32>
    %cst_56 = arith.constant 1.000000e+00 : f32
    %277 = vector.broadcast %cst_56 : f32 to vector<2x16xf32>
    %278 = arith.addf %277, %276 : vector<2x16xf32>
    %279 = arith.divf %277, %278 : vector<2x16xf32>
    %280 = vector.extract_strided_slice %260 {offsets = [0, 32], sizes = [2, 16], strides = [1, 1]} : vector<2x96xf32> to vector<2x16xf32>
    %281 = vector.extract_strided_slice %259 {offsets = [0, 32], sizes = [2, 16], strides = [1, 1]} : vector<2x96xf32> to vector<2x16xf32>
    %282 = arith.mulf %271, %281 : vector<2x16xf32>
    %283 = arith.addf %280, %282 : vector<2x16xf32>
    %284 = math.tanh %283 : vector<2x16xf32>
    %cst_57 = arith.constant 1.000000e+00 : f32
    %285 = vector.broadcast %cst_57 : f32 to vector<2x16xf32>
    %286 = arith.subf %285, %279 : vector<2x16xf32>
    %287 = arith.mulf %286, %284 : vector<2x16xf32>
    %288 = arith.mulf %279, %262 : vector<2x16xf32>
    %289 = arith.addf %287, %288 : vector<2x16xf32>
    %290 = vector.extract_strided_slice %261 {offsets = [0, 48], sizes = [2, 16], strides = [1, 1]} : vector<2x96xf32> to vector<2x16xf32>
    %291 = vector.extract_strided_slice %259 {offsets = [0, 48], sizes = [2, 16], strides = [1, 1]} : vector<2x96xf32> to vector<2x16xf32>
    %292 = arith.addf %290, %291 : vector<2x16xf32>
    %293 = arith.negf %292 : vector<2x16xf32>
    %294 = math.exp %293 : vector<2x16xf32>
    %cst_58 = arith.constant 1.000000e+00 : f32
    %295 = vector.broadcast %cst_58 : f32 to vector<2x16xf32>
    %296 = arith.addf %295, %294 : vector<2x16xf32>
    %297 = arith.divf %295, %296 : vector<2x16xf32>
    %298 = vector.extract_strided_slice %261 {offsets = [0, 64], sizes = [2, 16], strides = [1, 1]} : vector<2x96xf32> to vector<2x16xf32>
    %299 = vector.extract_strided_slice %259 {offsets = [0, 64], sizes = [2, 16], strides = [1, 1]} : vector<2x96xf32> to vector<2x16xf32>
    %300 = arith.addf %298, %299 : vector<2x16xf32>
    %301 = arith.negf %300 : vector<2x16xf32>
    %302 = math.exp %301 : vector<2x16xf32>
    %cst_59 = arith.constant 1.000000e+00 : f32
    %303 = vector.broadcast %cst_59 : f32 to vector<2x16xf32>
    %304 = arith.addf %303, %302 : vector<2x16xf32>
    %305 = arith.divf %303, %304 : vector<2x16xf32>
    %306 = vector.extract_strided_slice %261 {offsets = [0, 80], sizes = [2, 16], strides = [1, 1]} : vector<2x96xf32> to vector<2x16xf32>
    %307 = vector.extract_strided_slice %259 {offsets = [0, 80], sizes = [2, 16], strides = [1, 1]} : vector<2x96xf32> to vector<2x16xf32>
    %308 = arith.mulf %297, %307 : vector<2x16xf32>
    %309 = arith.addf %306, %308 : vector<2x16xf32>
    %310 = math.tanh %309 : vector<2x16xf32>
    %cst_60 = arith.constant 1.000000e+00 : f32
    %311 = vector.broadcast %cst_60 : f32 to vector<2x16xf32>
    %312 = arith.subf %311, %305 : vector<2x16xf32>
    %313 = arith.mulf %312, %310 : vector<2x16xf32>
    %314 = arith.mulf %305, %263 : vector<2x16xf32>
    %315 = arith.addf %313, %314 : vector<2x16xf32>
    %316 = tpu.concatenate %289, %315 in 1 : vector<2x16xf32>, vector<2x16xf32> -> vector<2x32xf32>
    %c0_61 = arith.constant 0 : index
    %c0_62 = arith.constant 0 : index
    %317 = vector.load %arg2[%c0_61, %c0_62] : memref<32x96xf32, #tpu.memory_space<vmem>>, vector<32x96xf32>
    %cst_63 = arith.constant dense<0.000000e+00> : vector<2x96xf32>
    %318 = tpu.matmul %316, %317, %cst_63 {dimension_numbers = #tpu.dot_dimension_numbers<[1], [0], [0], [1], [0, 0, 1, 1], [], []>} : vector<2x32xf32>, vector<32x96xf32>, vector<2x96xf32> -> vector<2x96xf32>
    %c0_64 = arith.constant 0 : index
    %c0_65 = arith.constant 0 : index
    %319 = vector.load %arg4[%c0_64, %c0_65] : memref<1x96xf32, #tpu.memory_space<vmem>>, vector<1x96xf32>
    %320 = vector.broadcast %319 : vector<1x96xf32> to vector<2x96xf32>
    %321 = arith.addf %318, %320 : vector<2x96xf32>
    %322 = vector.extract_strided_slice %5 {offsets = [10, 0], sizes = [2, 96], strides = [1, 1]} : vector<16x96xf32> to vector<2x96xf32>
    %323 = vector.extract_strided_slice %5 {offsets = [4, 0], sizes = [2, 96], strides = [1, 1]} : vector<16x96xf32> to vector<2x96xf32>
    %324 = vector.extract_strided_slice %316 {offsets = [0, 0], sizes = [2, 16], strides = [1, 1]} : vector<2x32xf32> to vector<2x16xf32>
    %325 = vector.extract_strided_slice %316 {offsets = [0, 16], sizes = [2, 16], strides = [1, 1]} : vector<2x32xf32> to vector<2x16xf32>
    %326 = vector.extract_strided_slice %322 {offsets = [0, 0], sizes = [2, 16], strides = [1, 1]} : vector<2x96xf32> to vector<2x16xf32>
    %327 = vector.extract_strided_slice %321 {offsets = [0, 0], sizes = [2, 16], strides = [1, 1]} : vector<2x96xf32> to vector<2x16xf32>
    %328 = arith.addf %326, %327 : vector<2x16xf32>
    %329 = arith.negf %328 : vector<2x16xf32>
    %330 = math.exp %329 : vector<2x16xf32>
    %cst_66 = arith.constant 1.000000e+00 : f32
    %331 = vector.broadcast %cst_66 : f32 to vector<2x16xf32>
    %332 = arith.addf %331, %330 : vector<2x16xf32>
    %333 = arith.divf %331, %332 : vector<2x16xf32>
    %334 = vector.extract_strided_slice %322 {offsets = [0, 16], sizes = [2, 16], strides = [1, 1]} : vector<2x96xf32> to vector<2x16xf32>
    %335 = vector.extract_strided_slice %321 {offsets = [0, 16], sizes = [2, 16], strides = [1, 1]} : vector<2x96xf32> to vector<2x16xf32>
    %336 = arith.addf %334, %335 : vector<2x16xf32>
    %337 = arith.negf %336 : vector<2x16xf32>
    %338 = math.exp %337 : vector<2x16xf32>
    %cst_67 = arith.constant 1.000000e+00 : f32
    %339 = vector.broadcast %cst_67 : f32 to vector<2x16xf32>
    %340 = arith.addf %339, %338 : vector<2x16xf32>
    %341 = arith.divf %339, %340 : vector<2x16xf32>
    %342 = vector.extract_strided_slice %322 {offsets = [0, 32], sizes = [2, 16], strides = [1, 1]} : vector<2x96xf32> to vector<2x16xf32>
    %343 = vector.extract_strided_slice %321 {offsets = [0, 32], sizes = [2, 16], strides = [1, 1]} : vector<2x96xf32> to vector<2x16xf32>
    %344 = arith.mulf %333, %343 : vector<2x16xf32>
    %345 = arith.addf %342, %344 : vector<2x16xf32>
    %346 = math.tanh %345 : vector<2x16xf32>
    %cst_68 = arith.constant 1.000000e+00 : f32
    %347 = vector.broadcast %cst_68 : f32 to vector<2x16xf32>
    %348 = arith.subf %347, %341 : vector<2x16xf32>
    %349 = arith.mulf %348, %346 : vector<2x16xf32>
    %350 = arith.mulf %341, %324 : vector<2x16xf32>
    %351 = arith.addf %349, %350 : vector<2x16xf32>
    %352 = vector.extract_strided_slice %323 {offsets = [0, 48], sizes = [2, 16], strides = [1, 1]} : vector<2x96xf32> to vector<2x16xf32>
    %353 = vector.extract_strided_slice %321 {offsets = [0, 48], sizes = [2, 16], strides = [1, 1]} : vector<2x96xf32> to vector<2x16xf32>
    %354 = arith.addf %352, %353 : vector<2x16xf32>
    %355 = arith.negf %354 : vector<2x16xf32>
    %356 = math.exp %355 : vector<2x16xf32>
    %cst_69 = arith.constant 1.000000e+00 : f32
    %357 = vector.broadcast %cst_69 : f32 to vector<2x16xf32>
    %358 = arith.addf %357, %356 : vector<2x16xf32>
    %359 = arith.divf %357, %358 : vector<2x16xf32>
    %360 = vector.extract_strided_slice %323 {offsets = [0, 64], sizes = [2, 16], strides = [1, 1]} : vector<2x96xf32> to vector<2x16xf32>
    %361 = vector.extract_strided_slice %321 {offsets = [0, 64], sizes = [2, 16], strides = [1, 1]} : vector<2x96xf32> to vector<2x16xf32>
    %362 = arith.addf %360, %361 : vector<2x16xf32>
    %363 = arith.negf %362 : vector<2x16xf32>
    %364 = math.exp %363 : vector<2x16xf32>
    %cst_70 = arith.constant 1.000000e+00 : f32
    %365 = vector.broadcast %cst_70 : f32 to vector<2x16xf32>
    %366 = arith.addf %365, %364 : vector<2x16xf32>
    %367 = arith.divf %365, %366 : vector<2x16xf32>
    %368 = vector.extract_strided_slice %323 {offsets = [0, 80], sizes = [2, 16], strides = [1, 1]} : vector<2x96xf32> to vector<2x16xf32>
    %369 = vector.extract_strided_slice %321 {offsets = [0, 80], sizes = [2, 16], strides = [1, 1]} : vector<2x96xf32> to vector<2x16xf32>
    %370 = arith.mulf %359, %369 : vector<2x16xf32>
    %371 = arith.addf %368, %370 : vector<2x16xf32>
    %372 = math.tanh %371 : vector<2x16xf32>
    %cst_71 = arith.constant 1.000000e+00 : f32
    %373 = vector.broadcast %cst_71 : f32 to vector<2x16xf32>
    %374 = arith.subf %373, %367 : vector<2x16xf32>
    %375 = arith.mulf %374, %372 : vector<2x16xf32>
    %376 = arith.mulf %367, %325 : vector<2x16xf32>
    %377 = arith.addf %375, %376 : vector<2x16xf32>
    %378 = tpu.concatenate %351, %377 in 1 : vector<2x16xf32>, vector<2x16xf32> -> vector<2x32xf32>
    %c0_72 = arith.constant 0 : index
    %c0_73 = arith.constant 0 : index
    %379 = vector.load %arg2[%c0_72, %c0_73] : memref<32x96xf32, #tpu.memory_space<vmem>>, vector<32x96xf32>
    %cst_74 = arith.constant dense<0.000000e+00> : vector<2x96xf32>
    %380 = tpu.matmul %378, %379, %cst_74 {dimension_numbers = #tpu.dot_dimension_numbers<[1], [0], [0], [1], [0, 0, 1, 1], [], []>} : vector<2x32xf32>, vector<32x96xf32>, vector<2x96xf32> -> vector<2x96xf32>
    %c0_75 = arith.constant 0 : index
    %c0_76 = arith.constant 0 : index
    %381 = vector.load %arg4[%c0_75, %c0_76] : memref<1x96xf32, #tpu.memory_space<vmem>>, vector<1x96xf32>
    %382 = vector.broadcast %381 : vector<1x96xf32> to vector<2x96xf32>
    %383 = arith.addf %380, %382 : vector<2x96xf32>
    %384 = vector.extract_strided_slice %5 {offsets = [12, 0], sizes = [2, 96], strides = [1, 1]} : vector<16x96xf32> to vector<2x96xf32>
    %385 = vector.extract_strided_slice %5 {offsets = [2, 0], sizes = [2, 96], strides = [1, 1]} : vector<16x96xf32> to vector<2x96xf32>
    %386 = vector.extract_strided_slice %378 {offsets = [0, 0], sizes = [2, 16], strides = [1, 1]} : vector<2x32xf32> to vector<2x16xf32>
    %387 = vector.extract_strided_slice %378 {offsets = [0, 16], sizes = [2, 16], strides = [1, 1]} : vector<2x32xf32> to vector<2x16xf32>
    %388 = vector.extract_strided_slice %384 {offsets = [0, 0], sizes = [2, 16], strides = [1, 1]} : vector<2x96xf32> to vector<2x16xf32>
    %389 = vector.extract_strided_slice %383 {offsets = [0, 0], sizes = [2, 16], strides = [1, 1]} : vector<2x96xf32> to vector<2x16xf32>
    %390 = arith.addf %388, %389 : vector<2x16xf32>
    %391 = arith.negf %390 : vector<2x16xf32>
    %392 = math.exp %391 : vector<2x16xf32>
    %cst_77 = arith.constant 1.000000e+00 : f32
    %393 = vector.broadcast %cst_77 : f32 to vector<2x16xf32>
    %394 = arith.addf %393, %392 : vector<2x16xf32>
    %395 = arith.divf %393, %394 : vector<2x16xf32>
    %396 = vector.extract_strided_slice %384 {offsets = [0, 16], sizes = [2, 16], strides = [1, 1]} : vector<2x96xf32> to vector<2x16xf32>
    %397 = vector.extract_strided_slice %383 {offsets = [0, 16], sizes = [2, 16], strides = [1, 1]} : vector<2x96xf32> to vector<2x16xf32>
    %398 = arith.addf %396, %397 : vector<2x16xf32>
    %399 = arith.negf %398 : vector<2x16xf32>
    %400 = math.exp %399 : vector<2x16xf32>
    %cst_78 = arith.constant 1.000000e+00 : f32
    %401 = vector.broadcast %cst_78 : f32 to vector<2x16xf32>
    %402 = arith.addf %401, %400 : vector<2x16xf32>
    %403 = arith.divf %401, %402 : vector<2x16xf32>
    %404 = vector.extract_strided_slice %384 {offsets = [0, 32], sizes = [2, 16], strides = [1, 1]} : vector<2x96xf32> to vector<2x16xf32>
    %405 = vector.extract_strided_slice %383 {offsets = [0, 32], sizes = [2, 16], strides = [1, 1]} : vector<2x96xf32> to vector<2x16xf32>
    %406 = arith.mulf %395, %405 : vector<2x16xf32>
    %407 = arith.addf %404, %406 : vector<2x16xf32>
    %408 = math.tanh %407 : vector<2x16xf32>
    %cst_79 = arith.constant 1.000000e+00 : f32
    %409 = vector.broadcast %cst_79 : f32 to vector<2x16xf32>
    %410 = arith.subf %409, %403 : vector<2x16xf32>
    %411 = arith.mulf %410, %408 : vector<2x16xf32>
    %412 = arith.mulf %403, %386 : vector<2x16xf32>
    %413 = arith.addf %411, %412 : vector<2x16xf32>
    %414 = vector.extract_strided_slice %385 {offsets = [0, 48], sizes = [2, 16], strides = [1, 1]} : vector<2x96xf32> to vector<2x16xf32>
    %415 = vector.extract_strided_slice %383 {offsets = [0, 48], sizes = [2, 16], strides = [1, 1]} : vector<2x96xf32> to vector<2x16xf32>
    %416 = arith.addf %414, %415 : vector<2x16xf32>
    %417 = arith.negf %416 : vector<2x16xf32>
    %418 = math.exp %417 : vector<2x16xf32>
    %cst_80 = arith.constant 1.000000e+00 : f32
    %419 = vector.broadcast %cst_80 : f32 to vector<2x16xf32>
    %420 = arith.addf %419, %418 : vector<2x16xf32>
    %421 = arith.divf %419, %420 : vector<2x16xf32>
    %422 = vector.extract_strided_slice %385 {offsets = [0, 64], sizes = [2, 16], strides = [1, 1]} : vector<2x96xf32> to vector<2x16xf32>
    %423 = vector.extract_strided_slice %383 {offsets = [0, 64], sizes = [2, 16], strides = [1, 1]} : vector<2x96xf32> to vector<2x16xf32>
    %424 = arith.addf %422, %423 : vector<2x16xf32>
    %425 = arith.negf %424 : vector<2x16xf32>
    %426 = math.exp %425 : vector<2x16xf32>
    %cst_81 = arith.constant 1.000000e+00 : f32
    %427 = vector.broadcast %cst_81 : f32 to vector<2x16xf32>
    %428 = arith.addf %427, %426 : vector<2x16xf32>
    %429 = arith.divf %427, %428 : vector<2x16xf32>
    %430 = vector.extract_strided_slice %385 {offsets = [0, 80], sizes = [2, 16], strides = [1, 1]} : vector<2x96xf32> to vector<2x16xf32>
    %431 = vector.extract_strided_slice %383 {offsets = [0, 80], sizes = [2, 16], strides = [1, 1]} : vector<2x96xf32> to vector<2x16xf32>
    %432 = arith.mulf %421, %431 : vector<2x16xf32>
    %433 = arith.addf %430, %432 : vector<2x16xf32>
    %434 = math.tanh %433 : vector<2x16xf32>
    %cst_82 = arith.constant 1.000000e+00 : f32
    %435 = vector.broadcast %cst_82 : f32 to vector<2x16xf32>
    %436 = arith.subf %435, %429 : vector<2x16xf32>
    %437 = arith.mulf %436, %434 : vector<2x16xf32>
    %438 = arith.mulf %429, %387 : vector<2x16xf32>
    %439 = arith.addf %437, %438 : vector<2x16xf32>
    %440 = tpu.concatenate %413, %439 in 1 : vector<2x16xf32>, vector<2x16xf32> -> vector<2x32xf32>
    %c0_83 = arith.constant 0 : index
    %c0_84 = arith.constant 0 : index
    %441 = vector.load %arg2[%c0_83, %c0_84] : memref<32x96xf32, #tpu.memory_space<vmem>>, vector<32x96xf32>
    %cst_85 = arith.constant dense<0.000000e+00> : vector<2x96xf32>
    %442 = tpu.matmul %440, %441, %cst_85 {dimension_numbers = #tpu.dot_dimension_numbers<[1], [0], [0], [1], [0, 0, 1, 1], [], []>} : vector<2x32xf32>, vector<32x96xf32>, vector<2x96xf32> -> vector<2x96xf32>
    %c0_86 = arith.constant 0 : index
    %c0_87 = arith.constant 0 : index
    %443 = vector.load %arg4[%c0_86, %c0_87] : memref<1x96xf32, #tpu.memory_space<vmem>>, vector<1x96xf32>
    %444 = vector.broadcast %443 : vector<1x96xf32> to vector<2x96xf32>
    %445 = arith.addf %442, %444 : vector<2x96xf32>
    %446 = vector.extract_strided_slice %5 {offsets = [14, 0], sizes = [2, 96], strides = [1, 1]} : vector<16x96xf32> to vector<2x96xf32>
    %447 = vector.extract_strided_slice %5 {offsets = [0, 0], sizes = [2, 96], strides = [1, 1]} : vector<16x96xf32> to vector<2x96xf32>
    %448 = vector.extract_strided_slice %440 {offsets = [0, 0], sizes = [2, 16], strides = [1, 1]} : vector<2x32xf32> to vector<2x16xf32>
    %449 = vector.extract_strided_slice %440 {offsets = [0, 16], sizes = [2, 16], strides = [1, 1]} : vector<2x32xf32> to vector<2x16xf32>
    %450 = vector.extract_strided_slice %446 {offsets = [0, 0], sizes = [2, 16], strides = [1, 1]} : vector<2x96xf32> to vector<2x16xf32>
    %451 = vector.extract_strided_slice %445 {offsets = [0, 0], sizes = [2, 16], strides = [1, 1]} : vector<2x96xf32> to vector<2x16xf32>
    %452 = arith.addf %450, %451 : vector<2x16xf32>
    %453 = arith.negf %452 : vector<2x16xf32>
    %454 = math.exp %453 : vector<2x16xf32>
    %cst_88 = arith.constant 1.000000e+00 : f32
    %455 = vector.broadcast %cst_88 : f32 to vector<2x16xf32>
    %456 = arith.addf %455, %454 : vector<2x16xf32>
    %457 = arith.divf %455, %456 : vector<2x16xf32>
    %458 = vector.extract_strided_slice %446 {offsets = [0, 16], sizes = [2, 16], strides = [1, 1]} : vector<2x96xf32> to vector<2x16xf32>
    %459 = vector.extract_strided_slice %445 {offsets = [0, 16], sizes = [2, 16], strides = [1, 1]} : vector<2x96xf32> to vector<2x16xf32>
    %460 = arith.addf %458, %459 : vector<2x16xf32>
    %461 = arith.negf %460 : vector<2x16xf32>
    %462 = math.exp %461 : vector<2x16xf32>
    %cst_89 = arith.constant 1.000000e+00 : f32
    %463 = vector.broadcast %cst_89 : f32 to vector<2x16xf32>
    %464 = arith.addf %463, %462 : vector<2x16xf32>
    %465 = arith.divf %463, %464 : vector<2x16xf32>
    %466 = vector.extract_strided_slice %446 {offsets = [0, 32], sizes = [2, 16], strides = [1, 1]} : vector<2x96xf32> to vector<2x16xf32>
    %467 = vector.extract_strided_slice %445 {offsets = [0, 32], sizes = [2, 16], strides = [1, 1]} : vector<2x96xf32> to vector<2x16xf32>
    %468 = arith.mulf %457, %467 : vector<2x16xf32>
    %469 = arith.addf %466, %468 : vector<2x16xf32>
    %470 = math.tanh %469 : vector<2x16xf32>
    %cst_90 = arith.constant 1.000000e+00 : f32
    %471 = vector.broadcast %cst_90 : f32 to vector<2x16xf32>
    %472 = arith.subf %471, %465 : vector<2x16xf32>
    %473 = arith.mulf %472, %470 : vector<2x16xf32>
    %474 = arith.mulf %465, %448 : vector<2x16xf32>
    %475 = arith.addf %473, %474 : vector<2x16xf32>
    %476 = vector.extract_strided_slice %447 {offsets = [0, 48], sizes = [2, 16], strides = [1, 1]} : vector<2x96xf32> to vector<2x16xf32>
    %477 = vector.extract_strided_slice %445 {offsets = [0, 48], sizes = [2, 16], strides = [1, 1]} : vector<2x96xf32> to vector<2x16xf32>
    %478 = arith.addf %476, %477 : vector<2x16xf32>
    %479 = arith.negf %478 : vector<2x16xf32>
    %480 = math.exp %479 : vector<2x16xf32>
    %cst_91 = arith.constant 1.000000e+00 : f32
    %481 = vector.broadcast %cst_91 : f32 to vector<2x16xf32>
    %482 = arith.addf %481, %480 : vector<2x16xf32>
    %483 = arith.divf %481, %482 : vector<2x16xf32>
    %484 = vector.extract_strided_slice %447 {offsets = [0, 64], sizes = [2, 16], strides = [1, 1]} : vector<2x96xf32> to vector<2x16xf32>
    %485 = vector.extract_strided_slice %445 {offsets = [0, 64], sizes = [2, 16], strides = [1, 1]} : vector<2x96xf32> to vector<2x16xf32>
    %486 = arith.addf %484, %485 : vector<2x16xf32>
    %487 = arith.negf %486 : vector<2x16xf32>
    %488 = math.exp %487 : vector<2x16xf32>
    %cst_92 = arith.constant 1.000000e+00 : f32
    %489 = vector.broadcast %cst_92 : f32 to vector<2x16xf32>
    %490 = arith.addf %489, %488 : vector<2x16xf32>
    %491 = arith.divf %489, %490 : vector<2x16xf32>
    %492 = vector.extract_strided_slice %447 {offsets = [0, 80], sizes = [2, 16], strides = [1, 1]} : vector<2x96xf32> to vector<2x16xf32>
    %493 = vector.extract_strided_slice %445 {offsets = [0, 80], sizes = [2, 16], strides = [1, 1]} : vector<2x96xf32> to vector<2x16xf32>
    %494 = arith.mulf %483, %493 : vector<2x16xf32>
    %495 = arith.addf %492, %494 : vector<2x16xf32>
    %496 = math.tanh %495 : vector<2x16xf32>
    %cst_93 = arith.constant 1.000000e+00 : f32
    %497 = vector.broadcast %cst_93 : f32 to vector<2x16xf32>
    %498 = arith.subf %497, %491 : vector<2x16xf32>
    %499 = arith.mulf %498, %496 : vector<2x16xf32>
    %500 = arith.mulf %491, %449 : vector<2x16xf32>
    %501 = arith.addf %499, %500 : vector<2x16xf32>
    %502 = tpu.concatenate %41, %501 in 1 : vector<2x16xf32>, vector<2x16xf32> -> vector<2x32xf32>
    %503 = tpu.concatenate %103, %439 in 1 : vector<2x16xf32>, vector<2x16xf32> -> vector<2x32xf32>
    %504 = tpu.concatenate %165, %377 in 1 : vector<2x16xf32>, vector<2x16xf32> -> vector<2x32xf32>
    %505 = tpu.concatenate %227, %315 in 1 : vector<2x16xf32>, vector<2x16xf32> -> vector<2x32xf32>
    %506 = tpu.concatenate %289, %253 in 1 : vector<2x16xf32>, vector<2x16xf32> -> vector<2x32xf32>
    %507 = tpu.concatenate %351, %191 in 1 : vector<2x16xf32>, vector<2x16xf32> -> vector<2x32xf32>
    %508 = tpu.concatenate %413, %129 in 1 : vector<2x16xf32>, vector<2x16xf32> -> vector<2x32xf32>
    %509 = tpu.concatenate %475, %67 in 1 : vector<2x16xf32>, vector<2x16xf32> -> vector<2x32xf32>
    %510 = vector.shape_cast %502 : vector<2x32xf32> to vector<1x2x32xf32>
    %511 = vector.shape_cast %503 : vector<2x32xf32> to vector<1x2x32xf32>
    %512 = vector.shape_cast %504 : vector<2x32xf32> to vector<1x2x32xf32>
    %513 = vector.shape_cast %505 : vector<2x32xf32> to vector<1x2x32xf32>
    %514 = vector.shape_cast %506 : vector<2x32xf32> to vector<1x2x32xf32>
    %515 = vector.shape_cast %507 : vector<2x32xf32> to vector<1x2x32xf32>
    %516 = vector.shape_cast %508 : vector<2x32xf32> to vector<1x2x32xf32>
    %517 = vector.shape_cast %509 : vector<2x32xf32> to vector<1x2x32xf32>
    %518 = tpu.concatenate %510, %511, %512, %513, %514, %515, %516, %517 in 0 : vector<1x2x32xf32>, vector<1x2x32xf32>, vector<1x2x32xf32>, vector<1x2x32xf32>, vector<1x2x32xf32>, vector<1x2x32xf32>, vector<1x2x32xf32>, vector<1x2x32xf32> -> vector<8x2x32xf32>
    %c0_94 = arith.constant 0 : index
    %c0_95 = arith.constant 0 : index
    %c0_96 = arith.constant 0 : index
    %519 = vector.load %arg5[%c0_94, %c0_95, %c0_96] : memref<8x2x32xf32, #tpu.memory_space<vmem>>, vector<8x2x32xf32>
    tpu.vector_store %arg5[%c0_94, %c0_95, %c0_96], %518 {strides = array<i32>} : memref<8x2x32xf32, #tpu.memory_space<vmem>>, vector<8x2x32xf32>,
    return
  }
}

</mosaic_0001>

<llo_original>
// kernel: feature_encoder_forward.3
$region0: #{feature_encoder_forward.3}
  #allocation0 [shape = 'u32[]', space=smem, size = 0x4, offset = 0x4, fixed_abs, tag = 'smem constant byte address 0x4 - core index']
  #allocation1 [shape = 'u32[144,128]{1,0:T(1,128)}', space=vmem, size = 0x12000, scoped, tag = 'internal scratch']
  %s0 = inlined_call_operand.vmem [shape: f32[32,32], index: 0, kind: input, shape index: {}]
  %s1 = inlined_call_operand.vmem [shape: f32[32,32], index: 1, kind: input, shape index: {}]
  %s2 = inlined_call_operand.vmem [shape: f32[1,32], index: 2, kind: input, shape index: {}]
  %s3 = inlined_call_operand.vmem [shape: f32[8,16], index: 3, kind: input, shape index: {}]
  %s4 = inlined_call_operand.vmem [shape: f32[8,32], index: 4, kind: input, shape index: {}]
  %s5 = inlined_call_operand.vmem [shape: f32[2,8,32], index: 5, kind: output, shape index: {}]
  %s6 = sld [smem:[#allocation0]]
  $region30: #{feature_encoder_forward.3} parent=0
    _
  %s8 = ssub.s32 1, %s6
  %s9 = scalar_select 0, %s8, %s6
  // Predicated region
  $region2: #{feature_encoder_forward.3} parent=0 // pred_check
    _
  $region3: #{feature_encoder_forward.3} parent=0 // pred_check_branch
    %11 = sbr.rel (0) target = $region5
  $region4: #{feature_encoder_forward.3} parent=0 // pred_region
    _
  $region5: #{feature_encoder_forward.3} parent=0 // pred_fallthru
    _
  // Predicated region
  $region6: #{feature_encoder_forward.3} parent=0 // pred_check
    _
  $region7: #{feature_encoder_forward.3} parent=0 // pred_check_branch
    %13 = sbr.rel (0) target = $region9
  $region8: #{feature_encoder_forward.3} parent=0 // pred_region
    _
  $region9: #{feature_encoder_forward.3} parent=0 // pred_fallthru
    _
  // Predicated region
  $region10: #{feature_encoder_forward.3} parent=0 // pred_check
    _
  $region11: #{feature_encoder_forward.3} parent=0 // pred_check_branch
    %15 = sbr.rel (0) target = $region13
  $region12: #{feature_encoder_forward.3} parent=0 // pred_region
    _
  $region13: #{feature_encoder_forward.3} parent=0 // pred_fallthru
    _
  // Predicated region
  $region14: #{feature_encoder_forward.3} parent=0 // pred_check
    _
  $region15: #{feature_encoder_forward.3} parent=0 // pred_check_branch
    %17 = sbr.rel (0) target = $region17
  $region16: #{feature_encoder_forward.3} parent=0 // pred_region
    _
  $region17: #{feature_encoder_forward.3} parent=0 // pred_fallthru
    _
  // Predicated region
  $region18: #{feature_encoder_forward.3} parent=0 // pred_check
    _
  $region19: #{feature_encoder_forward.3} parent=0 // pred_check_branch
    %19 = sbr.rel (0) target = $region21
  $region20: #{feature_encoder_forward.3} parent=0 // pred_region
    _
  $region21: #{feature_encoder_forward.3} parent=0 // pred_fallthru
    _
  %v20 = vld [vmem:[%s0] sm:$0xff]
  %v21 = vld [vmem:[%s0 + $0x8] sm:$0xff]
  %v22 = vld [vmem:[%s0 + $0x10] sm:$0xff]
  %v23 = vld [vmem:[%s0 + $0x18] sm:$0xff]
  %v24 = vld [vmem:[%s1] sm:$0xff]
  %v25 = vld [vmem:[%s1 + $0x8] sm:$0xff]
  %v26 = vld [vmem:[%s1 + $0x10] sm:$0xff]
  %v27 = vld [vmem:[%s1 + $0x18] sm:$0xff]
  %v28 = vld [vmem:[%s2] sm:$0x1]
  %v30 = vlaneseq
  %v31 = vshrl.u32 %v30, 7
  %v32 = vsub.s32 0, %v31
  %v33 = vrot.slane %v28, %v32
  %vm35 = vcmask 261120
  %v37 = vsel %vm35, %v20, 0
  %v40 = vsel %vm35, %v21, 0
  %v43 = vsel %vm35, %v22, 0
  %v46 = vsel %vm35, %v23, 0
  %48 = vmatprep.subr.mxu0 0.0
  %49 = vmatpush1.msra.mxu0 %v24
  %50 = vmatprep.subr.mxu0 0.0
  %51 = vmatpush1.msra.mxu0 %v25
  %52 = vmatprep.subr.mxu0 0.0
  %53 = vmatpush1.msra.mxu0 %v26
  %54 = vmatprep.subr.mxu0 0.0
  %55 = vmatpush1.msra.mxu0 %v27
  %56 = vmatprep.subr.mxu0 0.0
  %57 = vmatpush1.msra.mxu0 0.0
  %58 = vmatprep.subr.mxu0 0.0
  %59 = vmatpush1.msra.mxu0 0.0
  %60 = vmatprep.subr.mxu0 0.0
  %61 = vmatpush1.msra.mxu0 0.0
  %62 = vmatprep.subr.mxu0 0.0
  %63 = vmatpush1.msra.mxu0 0.0
  %64 = vmatprep.subr.mxu0 0.0
  %65 = vmatpush1.msra.mxu0 0.0
  %66 = vmatprep.subr.mxu0 0.0
  %67 = vmatpush1.msra.mxu0 0.0
  %68 = vmatprep.subr.mxu0 0.0
  %69 = vmatpush1.msra.mxu0 0.0
  %70 = vmatprep.subr.mxu0 0.0
  %71 = vmatpush1.msra.mxu0 0.0
  %72 = vmatprep.subr.mxu0 0.0
  %73 = vmatpush1.msra.mxu0 0.0
  %74 = vmatprep.subr.mxu0 0.0
  %75 = vmatpush1.msra.mxu0 0.0
  %76 = vmatprep.subr.mxu0 0.0
  %77 = vmatpush1.msra.mxu0 0.0
  %78 = vmatprep.subr.mxu0 0.0
  %79 = vmatpush1.msra.mxu0 0.0
  %80 = vmatprep.subr.mxu0 0.0
  %81 = vmatpush1.msra.mxu0 0.0
  %82 = vmatprep.subr.mxu0 0.0
  %83 = vmatpush1.msra.mxu0 0.0
  %84 = vmatprep.subr.mxu0 0.0
  %85 = vmatpush1.msra.mxu0 0.0
  %86 = vmatprep.subr.mxu0 0.0
  %87 = vmatpush1.msra.mxu0 0.0
  %88 = vmatprep.subr.mxu0 0.0
  %89 = vmatpush1.msra.mxu0 0.0
  %90 = vmatprep.subr.mxu0 0.0
  %91 = vmatpush1.msra.mxu0 0.0
  %92 = vmatprep.subr.mxu0 0.0
  %93 = vmatpush1.msra.mxu0 0.0
  %94 = vmatprep.subr.mxu0 0.0
  %95 = vmatpush1.msra.mxu0 0.0
  %96 = vmatprep.subr.mxu0 0.0
  %97 = vmatpush1.msra.mxu0 0.0
  %98 = vmatprep.subr.mxu0 0.0
  %99 = vmatpush1.msra.mxu0 0.0
  %100 = vmatprep.subr.mxu0 0.0
  %101 = vmatpush1.msra.mxu0 0.0
  %102 = vmatprep.subr.mxu0 0.0
  %103 = vmatpush1.msra.mxu0 0.0
  %104 = vmatprep.subr.mxu0 0.0
  %105 = vmatpush1.msra.mxu0 0.0
  %106 = vmatprep.subr.mxu0 0.0
  %107 = vmatpush1.msra.mxu0 0.0
  %108 = vmatprep.subr.mxu0 0.0
  %109 = vmatpush1.msra.mxu0 0.0
  %110 = vmatprep.subr.mxu0 0.0
  %111 = vmatpush1.msra.mxu0 0.0
  %112 = vmatprep.mubr.f32.mxu0 0.0
  %113 = vmatmul.mubr.f32.gmra.mrb[0].mxu0 %v37
  %v114 = vpop.f32.mrb[0].mxu0
  %v115 = vadd.f32 %v33, %v114
  %v116 = vpop.f32.mrb[0].mxu0
  %117 = vmatprep.mubr.f32.mxu0 0.0
  %118 = vmatmul.mubr.f32.gmra.mrb[0].mxu0 %v40
  %v119 = vpop.f32.mrb[0].mxu0
  %v120 = vadd.f32 %v33, %v119
  %v121 = vpop.f32.mrb[0].mxu0
  %122 = vmatprep.mubr.f32.mxu0 0.0
  %123 = vmatmul.mubr.f32.gmra.mrb[0].mxu0 %v43
  %v124 = vpop.f32.mrb[0].mxu0
  %v125 = vadd.f32 %v33, %v124
  %v126 = vpop.f32.mrb[0].mxu0
  %127 = vmatprep.mubr.f32.mxu0 0.0
  %128 = vmatmul.mubr.f32.gmra.mrb[0].mxu0 %v46
  %v129 = vpop.f32.mrb[0].mxu0
  %v130 = vadd.f32 %v33, %v129
  %v131 = vpop.f32.mrb[0].mxu0
  %132 = vdwg.mxu0
  %v133 = vmax.f32 %v115, 0.0
  %v134 = vmax.f32 %v120, 0.0
  %v135 = vmax.f32 %v125, 0.0
  %v136 = vmax.f32 %v130, 0.0
  %v137 = vld [vmem:[%s3] sm:$0xff]
  %v138 = vld [vmem:[%s4] sm:$0xff]
  %vm139 = vcmask 130048
  %v141 = vsel %vm139, %v137, 0
  %143 = vmatprep.subr.mxu0 0.0
  %144 = vmatpush1.msra.mxu0 %v133
  %145 = vmatprep.subr.mxu0 0.0
  %146 = vmatpush1.msra.mxu0 %v134
  %147 = vmatprep.subr.mxu0 0.0
  %148 = vmatpush1.msra.mxu0 0.0
  %149 = vmatprep.subr.mxu0 0.0
  %150 = vmatpush1.msra.mxu0 0.0
  %151 = vmatprep.subr.mxu0 0.0
  %152 = vmatpush1.msra.mxu0 0.0
  %153 = vmatprep.subr.mxu0 0.0
  %154 = vmatpush1.msra.mxu0 0.0
  %155 = vmatprep.subr.mxu0 0.0
  %156 = vmatpush1.msra.mxu0 0.0
  %157 = vmatprep.subr.mxu0 0.0
  %158 = vmatpush1.msra.mxu0 0.0
  %159 = vmatprep.subr.mxu0 0.0
  %160 = vmatpush1.msra.mxu0 0.0
  %161 = vmatprep.subr.mxu0 0.0
  %162 = vmatpush1.msra.mxu0 0.0
  %163 = vmatprep.subr.mxu0 0.0
  %164 = vmatpush1.msra.mxu0 0.0
  %165 = vmatprep.subr.mxu0 0.0
  %166 = vmatpush1.msra.mxu0 0.0
  %167 = vmatprep.subr.mxu0 0.0
  %168 = vmatpush1.msra.mxu0 0.0
  %169 = vmatprep.subr.mxu0 0.0
  %170 = vmatpush1.msra.mxu0 0.0
  %171 = vmatprep.subr.mxu0 0.0
  %172 = vmatpush1.msra.mxu0 0.0
  %173 = vmatprep.subr.mxu0 0.0
  %174 = vmatpush1.msra.mxu0 0.0
  %175 = vmatprep.subr.mxu0 0.0
  %176 = vmatpush1.msra.mxu0 0.0
  %177 = vmatprep.subr.mxu0 0.0
  %178 = vmatpush1.msra.mxu0 0.0
  %179 = vmatprep.subr.mxu0 0.0
  %180 = vmatpush1.msra.mxu0 0.0
  %181 = vmatprep.subr.mxu0 0.0
  %182 = vmatpush1.msra.mxu0 0.0
  %183 = vmatprep.subr.mxu0 0.0
  %184 = vmatpush1.msra.mxu0 0.0
  %185 = vmatprep.subr.mxu0 0.0
  %186 = vmatpush1.msra.mxu0 0.0
  %187 = vmatprep.subr.mxu0 0.0
  %188 = vmatpush1.msra.mxu0 0.0
  %189 = vmatprep.subr.mxu0 0.0
  %190 = vmatpush1.msra.mxu0 0.0
  %191 = vmatprep.subr.mxu0 0.0
  %192 = vmatpush1.msra.mxu0 0.0
  %193 = vmatprep.subr.mxu0 0.0
  %194 = vmatpush1.msra.mxu0 0.0
  %195 = vmatprep.subr.mxu0 0.0
  %196 = vmatpush1.msra.mxu0 0.0
  %197 = vmatprep.subr.mxu0 0.0
  %198 = vmatpush1.msra.mxu0 0.0
  %199 = vmatprep.subr.mxu0 0.0
  %200 = vmatpush1.msra.mxu0 0.0
  %201 = vmatprep.subr.mxu0 0.0
  %202 = vmatpush1.msra.mxu0 0.0
  %203 = vmatprep.subr.mxu0 0.0
  %204 = vmatpush1.msra.mxu0 0.0
  %205 = vmatprep.subr.mxu0 0.0
  %206 = vmatpush1.msra.mxu0 0.0
  %207 = vmatprep.mubr.f32.mxu0 0.0
  %208 = vmatmul.mubr.f32.gmra.mrb[0].mxu0 %v141
  %v209 = vpop.f32.mrb[0].mxu0
  %v210 = vadd.f32 %v138, %v209
  %v211 = vpop.f32.mrb[0].mxu0
  %212 = vdwg.mxu0
  %213 = vst.msk [vmem:[%s5] sm:$0xff] %vm35, %v210
  %v214 = vld [vmem:[%s3] sm:$0xff]
  %v215 = vld [vmem:[%s4] sm:$0xff]
  %v217 = vsel %vm139, %v214, 0
  %219 = vmatprep.subr.mxu0 0.0
  %220 = vmatpush1.msra.mxu0 %v135
  %221 = vmatprep.subr.mxu0 0.0
  %222 = vmatpush1.msra.mxu0 %v136
  %223 = vmatprep.subr.mxu0 0.0
  %224 = vmatpush1.msra.mxu0 0.0
  %225 = vmatprep.subr.mxu0 0.0
  %226 = vmatpush1.msra.mxu0 0.0
  %227 = vmatprep.subr.mxu0 0.0
  %228 = vmatpush1.msra.mxu0 0.0
  %229 = vmatprep.subr.mxu0 0.0
  %230 = vmatpush1.msra.mxu0 0.0
  %231 = vmatprep.subr.mxu0 0.0
  %232 = vmatpush1.msra.mxu0 0.0
  %233 = vmatprep.subr.mxu0 0.0
  %234 = vmatpush1.msra.mxu0 0.0
  %235 = vmatprep.subr.mxu0 0.0
  %236 = vmatpush1.msra.mxu0 0.0
  %237 = vmatprep.subr.mxu0 0.0
  %238 = vmatpush1.msra.mxu0 0.0
  %239 = vmatprep.subr.mxu0 0.0
  %240 = vmatpush1.msra.mxu0 0.0
  %241 = vmatprep.subr.mxu0 0.0
  %242 = vmatpush1.msra.mxu0 0.0
  %243 = vmatprep.subr.mxu0 0.0
  %244 = vmatpush1.msra.mxu0 0.0
  %245 = vmatprep.subr.mxu0 0.0
  %246 = vmatpush1.msra.mxu0 0.0
  %247 = vmatprep.subr.mxu0 0.0
  %248 = vmatpush1.msra.mxu0 0.0
  %249 = vmatprep.subr.mxu0 0.0
  %250 = vmatpush1.msra.mxu0 0.0
  %251 = vmatprep.subr.mxu0 0.0
  %252 = vmatpush1.msra.mxu0 0.0
  %253 = vmatprep.subr.mxu0 0.0
  %254 = vmatpush1.msra.mxu0 0.0
  %255 = vmatprep.subr.mxu0 0.0
  %256 = vmatpush1.msra.mxu0 0.0
  %257 = vmatprep.subr.mxu0 0.0
  %258 = vmatpush1.msra.mxu0 0.0
  %259 = vmatprep.subr.mxu0 0.0
  %260 = vmatpush1.msra.mxu0 0.0
  %261 = vmatprep.subr.mxu0 0.0
  %262 = vmatpush1.msra.mxu0 0.0
  %263 = vmatprep.subr.mxu0 0.0
  %264 = vmatpush1.msra.mxu0 0.0
  %265 = vmatprep.subr.mxu0 0.0
  %266 = vmatpush1.msra.mxu0 0.0
  %267 = vmatprep.subr.mxu0 0.0
  %268 = vmatpush1.msra.mxu0 0.0
  %269 = vmatprep.subr.mxu0 0.0
  %270 = vmatpush1.msra.mxu0 0.0
  %271 = vmatprep.subr.mxu0 0.0
  %272 = vmatpush1.msra.mxu0 0.0
  %273 = vmatprep.subr.mxu0 0.0
  %274 = vmatpush1.msra.mxu0 0.0
  %275 = vmatprep.subr.mxu0 0.0
  %276 = vmatpush1.msra.mxu0 0.0
  %277 = vmatprep.subr.mxu0 0.0
  %278 = vmatpush1.msra.mxu0 0.0
  %279 = vmatprep.subr.mxu0 0.0
  %280 = vmatpush1.msra.mxu0 0.0
  %281 = vmatprep.subr.mxu0 0.0
  %282 = vmatpush1.msra.mxu0 0.0
  %283 = vmatprep.mubr.f32.mxu0 0.0
  %284 = vmatmul.mubr.f32.gmra.mrb[0].mxu0 %v217
  %v285 = vpop.f32.mrb[0].mxu0
  %v286 = vadd.f32 %v215, %v285
  %v287 = vpop.f32.mrb[0].mxu0
  %288 = vdwg.mxu0
  %s289 = scalar_lea.vmem %s5, 8
  %290 = vst.msk [vmem:[%s289] sm:$0xff] %vm35, %v286
  // Predicated region
  $region22: #{feature_encoder_forward.3} parent=0 // pred_check
    _
  $region23: #{feature_encoder_forward.3} parent=0 // pred_check_branch
    %292 = sbr.rel (0) target = $region25
  $region24: #{feature_encoder_forward.3} parent=0 // pred_region
    _
  $region25: #{feature_encoder_forward.3} parent=0 // pred_fallthru
    _
  // Predicated region
  $region26: #{feature_encoder_forward.3} parent=0 // pred_check
    _
  $region27: #{feature_encoder_forward.3} parent=0 // pred_check_branch
    %294 = sbr.rel (0) target = $region29
  $region28: #{feature_encoder_forward.3} parent=0 // pred_region
    _
  $region29: #{feature_encoder_forward.3} parent=0 // pred_fallthru
    _

// kernel: feature_encoder_forward.4
$region0: #{feature_encoder_forward.4}
  #allocation0 [shape = 'u32[]', space=smem, size = 0x4, offset = 0x4, fixed_abs, tag = 'smem constant byte address 0x4 - core index']
  #allocation1 [shape = 'u32[144,128]{1,0:T(1,128)}', space=vmem, size = 0x12000, scoped, tag = 'internal scratch']
  %s0 = inlined_call_operand.vmem [shape: f32[16,32], index: 0, kind: input, shape index: {}]
  %s1 = inlined_call_operand.vmem [shape: f32[32,96], index: 1, kind: input, shape index: {}]
  %s2 = inlined_call_operand.vmem [shape: f32[32,96], index: 2, kind: input, shape index: {}]
  %s3 = inlined_call_operand.vmem [shape: f32[1,96], index: 3, kind: input, shape index: {}]
  %s4 = inlined_call_operand.vmem [shape: f32[1,96], index: 4, kind: input, shape index: {}]
  %s5 = inlined_call_operand.vmem [shape: f32[8,2,32], index: 5, kind: output, shape index: {}]
  %s6 = sld [smem:[#allocation0]]
  $region30: #{feature_encoder_forward.4} parent=0
    _
  %s8 = ssub.s32 1, %s6
  %s9 = scalar_select 0, %s8, %s6
  // Predicated region
  $region2: #{feature_encoder_forward.4} parent=0 // pred_check
    _
  $region3: #{feature_encoder_forward.4} parent=0 // pred_check_branch
    %11 = sbr.rel (0) target = $region5
  $region4: #{feature_encoder_forward.4} parent=0 // pred_region
    _
  $region5: #{feature_encoder_forward.4} parent=0 // pred_fallthru
    _
  // Predicated region
  $region6: #{feature_encoder_forward.4} parent=0 // pred_check
    _
  $region7: #{feature_encoder_forward.4} parent=0 // pred_check_branch
    %13 = sbr.rel (0) target = $region9
  $region8: #{feature_encoder_forward.4} parent=0 // pred_region
    _
  $region9: #{feature_encoder_forward.4} parent=0 // pred_fallthru
    _
  // Predicated region
  $region10: #{feature_encoder_forward.4} parent=0 // pred_check
    _
  $region11: #{feature_encoder_forward.4} parent=0 // pred_check_branch
    %15 = sbr.rel (0) target = $region13
  $region12: #{feature_encoder_forward.4} parent=0 // pred_region
    _
  $region13: #{feature_encoder_forward.4} parent=0 // pred_fallthru
    _
  // Predicated region
  $region14: #{feature_encoder_forward.4} parent=0 // pred_check
    _
  $region15: #{feature_encoder_forward.4} parent=0 // pred_check_branch
    %17 = sbr.rel (0) target = $region17
  $region16: #{feature_encoder_forward.4} parent=0 // pred_region
    _
  $region17: #{feature_encoder_forward.4} parent=0 // pred_fallthru
    _
  // Predicated region
  $region18: #{feature_encoder_forward.4} parent=0 // pred_check
    _
  $region19: #{feature_encoder_forward.4} parent=0 // pred_check_branch
    %19 = sbr.rel (0) target = $region21
  $region20: #{feature_encoder_forward.4} parent=0 // pred_region
    _
  $region21: #{feature_encoder_forward.4} parent=0 // pred_fallthru
    _
  %v20 = vld [vmem:[%s0] sm:$0xff]
  %v21 = vld [vmem:[%s0 + $0x8] sm:$0xff]
  %v22 = vld [vmem:[%s1] sm:$0xff]
  %v23 = vld [vmem:[%s1 + $0x8] sm:$0xff]
  %v24 = vld [vmem:[%s1 + $0x10] sm:$0xff]
  %v25 = vld [vmem:[%s1 + $0x18] sm:$0xff]
  %v26 = vld [vmem:[%s3] sm:$0x1]
  %v28 = vlaneseq
  %v29 = vshrl.u32 %v28, 7
  %v30 = vsub.s32 0, %v29
  %v31 = vrot.slane %v26, %v30
  %vm33 = vcmask 261120
  %v35 = vsel %vm33, %v20, 0
  %v38 = vsel %vm33, %v21, 0
  %40 = vmatprep.subr.mxu0 0.0
  %41 = vmatpush1.msra.mxu0 %v22
  %42 = vmatprep.subr.mxu0 0.0
  %43 = vmatpush1.msra.mxu0 %v23
  %44 = vmatprep.subr.mxu0 0.0
  %45 = vmatpush1.msra.mxu0 %v24
  %46 = vmatprep.subr.mxu0 0.0
  %47 = vmatpush1.msra.mxu0 %v25
  %48 = vmatprep.subr.mxu0 0.0
  %49 = vmatpush1.msra.mxu0 0.0
  %50 = vmatprep.subr.mxu0 0.0
  %51 = vmatpush1.msra.mxu0 0.0
  %52 = vmatprep.subr.mxu0 0.0
  %53 = vmatpush1.msra.mxu0 0.0
  %54 = vmatprep.subr.mxu0 0.0
  %55 = vmatpush1.msra.mxu0 0.0
  %56 = vmatprep.subr.mxu0 0.0
  %57 = vmatpush1.msra.mxu0 0.0
  %58 = vmatprep.subr.mxu0 0.0
  %59 = vmatpush1.msra.mxu0 0.0
  %60 = vmatprep.subr.mxu0 0.0
  %61 = vmatpush1.msra.mxu0 0.0
  %62 = vmatprep.subr.mxu0 0.0
  %63 = vmatpush1.msra.mxu0 0.0
  %64 = vmatprep.subr.mxu0 0.0
  %65 = vmatpush1.msra.mxu0 0.0
  %66 = vmatprep.subr.mxu0 0.0
  %67 = vmatpush1.msra.mxu0 0.0
  %68 = vmatprep.subr.mxu0 0.0
  %69 = vmatpush1.msra.mxu0 0.0
  %70 = vmatprep.subr.mxu0 0.0
  %71 = vmatpush1.msra.mxu0 0.0
  %72 = vmatprep.subr.mxu0 0.0
  %73 = vmatpush1.msra.mxu0 0.0
  %74 = vmatprep.subr.mxu0 0.0
  %75 = vmatpush1.msra.mxu0 0.0
  %76 = vmatprep.subr.mxu0 0.0
  %77 = vmatpush1.msra.mxu0 0.0
  %78 = vmatprep.subr.mxu0 0.0
  %79 = vmatpush1.msra.mxu0 0.0
  %80 = vmatprep.subr.mxu0 0.0
  %81 = vmatpush1.msra.mxu0 0.0
  %82 = vmatprep.subr.mxu0 0.0
  %83 = vmatpush1.msra.mxu0 0.0
  %84 = vmatprep.subr.mxu0 0.0
  %85 = vmatpush1.msra.mxu0 0.0
  %86 = vmatprep.subr.mxu0 0.0
  %87 = vmatpush1.msra.mxu0 0.0
  %88 = vmatprep.subr.mxu0 0.0
  %89 = vmatpush1.msra.mxu0 0.0
  %90 = vmatprep.subr.mxu0 0.0
  %91 = vmatpush1.msra.mxu0 0.0
  %92 = vmatprep.subr.mxu0 0.0
  %93 = vmatpush1.msra.mxu0 0.0
  %94 = vmatprep.subr.mxu0 0.0
  %95 = vmatpush1.msra.mxu0 0.0
  %96 = vmatprep.subr.mxu0 0.0
  %97 = vmatpush1.msra.mxu0 0.0
  %98 = vmatprep.subr.mxu0 0.0
  %99 = vmatpush1.msra.mxu0 0.0
  %100 = vmatprep.subr.mxu0 0.0
  %101 = vmatpush1.msra.mxu0 0.0
  %102 = vmatprep.subr.mxu0 0.0
  %103 = vmatpush1.msra.mxu0 0.0
  %104 = vmatprep.mubr.f32.mxu0 0.0
  %105 = vmatmul.mubr.f32.gmra.mrb[0].mxu0 %v35
  %v106 = vpop.f32.mrb[0].mxu0
  %v107 = vadd.f32 %v31, %v106
  %v108 = vpop.f32.mrb[0].mxu0
  %109 = vmatprep.mubr.f32.mxu0 0.0
  %110 = vmatmul.mubr.f32.gmra.mrb[0].mxu0 %v38
  %v111 = vpop.f32.mrb[0].mxu0
  %v112 = vadd.f32 %v31, %v111
  %v113 = vpop.f32.mrb[0].mxu0
  %114 = vdwg.mxu0
  %v115 = vld [vmem:[%s2] sm:$0xff]
  %v116 = vld [vmem:[%s2 + $0x8] sm:$0xff]
  %v117 = vld [vmem:[%s2 + $0x10] sm:$0xff]
  %v118 = vld [vmem:[%s2 + $0x18] sm:$0xff]
  %v119 = vld [vmem:[%s4] sm:$0x1]
  %v121 = vlaneseq
  %v122 = vshrl.u32 %v121, 7
  %v123 = vsub.s32 0, %v122
  %v124 = vrot.slane %v119, %v123
  %v127 = vsel %vm33, 0.0, 0
  %129 = vmatprep.subr.mxu0 0.0
  %130 = vmatpush1.msra.mxu0 %v115
  %131 = vmatprep.subr.mxu0 0.0
  %132 = vmatpush1.msra.mxu0 %v116
  %133 = vmatprep.subr.mxu0 0.0
  %134 = vmatpush1.msra.mxu0 %v117
  %135 = vmatprep.subr.mxu0 0.0
  %136 = vmatpush1.msra.mxu0 %v118
  %137 = vmatprep.subr.mxu0 0.0
  %138 = vmatpush1.msra.mxu0 0.0
  %139 = vmatprep.subr.mxu0 0.0
  %140 = vmatpush1.msra.mxu0 0.0
  %141 = vmatprep.subr.mxu0 0.0
  %142 = vmatpush1.msra.mxu0 0.0
  %143 = vmatprep.subr.mxu0 0.0
  %144 = vmatpush1.msra.mxu0 0.0
  %145 = vmatprep.subr.mxu0 0.0
  %146 = vmatpush1.msra.mxu0 0.0
  %147 = vmatprep.subr.mxu0 0.0
  %148 = vmatpush1.msra.mxu0 0.0
  %149 = vmatprep.subr.mxu0 0.0
  %150 = vmatpush1.msra.mxu0 0.0
  %151 = vmatprep.subr.mxu0 0.0
  %152 = vmatpush1.msra.mxu0 0.0
  %153 = vmatprep.subr.mxu0 0.0
  %154 = vmatpush1.msra.mxu0 0.0
  %155 = vmatprep.subr.mxu0 0.0
  %156 = vmatpush1.msra.mxu0 0.0
  %157 = vmatprep.subr.mxu0 0.0
  %158 = vmatpush1.msra.mxu0 0.0
  %159 = vmatprep.subr.mxu0 0.0
  %160 = vmatpush1.msra.mxu0 0.0
  %161 = vmatprep.subr.mxu0 0.0
  %162 = vmatpush1.msra.mxu0 0.0
  %163 = vmatprep.subr.mxu0 0.0
  %164 = vmatpush1.msra.mxu0 0.0
  %165 = vmatprep.subr.mxu0 0.0
  %166 = vmatpush1.msra.mxu0 0.0
  %167 = vmatprep.subr.mxu0 0.0
  %168 = vmatpush1.msra.mxu0 0.0
  %169 = vmatprep.subr.mxu0 0.0
  %170 = vmatpush1.msra.mxu0 0.0
  %171 = vmatprep.subr.mxu0 0.0
  %172 = vmatpush1.msra.mxu0 0.0
  %173 = vmatprep.subr.mxu0 0.0
  %174 = vmatpush1.msra.mxu0 0.0
  %175 = vmatprep.subr.mxu0 0.0
  %176 = vmatpush1.msra.mxu0 0.0
  %177 = vmatprep.subr.mxu0 0.0
  %178 = vmatpush1.msra.mxu0 0.0
  %179 = vmatprep.subr.mxu0 0.0
  %180 = vmatpush1.msra.mxu0 0.0
  %181 = vmatprep.subr.mxu0 0.0
  %182 = vmatpush1.msra.mxu0 0.0
  %183 = vmatprep.subr.mxu0 0.0
  %184 = vmatpush1.msra.mxu0 0.0
  %185 = vmatprep.subr.mxu0 0.0
  %186 = vmatpush1.msra.mxu0 0.0
  %187 = vmatprep.subr.mxu0 0.0
  %188 = vmatpush1.msra.mxu0 0.0
  %189 = vmatprep.subr.mxu0 0.0
  %190 = vmatpush1.msra.mxu0 0.0
  %191 = vmatprep.subr.mxu0 0.0
  %192 = vmatpush1.msra.mxu0 0.0
  %193 = vmatprep.mubr.f32.mxu0 0.0
  %194 = vmatmul.mubr.f32.gmra.mrb[0].mxu0 %v127
  %v195 = vpop.f32.mrb[0].mxu0
  %v196 = vadd.f32 %v124, %v195
  %v197 = vpop.f32.mrb[0].mxu0
  %198 = vdwg.mxu0
  %v199 = vadd.f32 %v107, %v196
  %v200 = vxor.u32 %v199, 2147483648
  %v201 = vmul.f32 %v200, 1.442695
  %v202 = vpow.pop %v201
  %v203 = vadd.f32 %v202, 1.0
  %v204 = vrcp.pop %v203
  %v205 = vmul.f32 1.0, %v204
  %207 = vrot.lane.b32.xlu0 %v196, 96
  %v208 = vpop.permute.xlu0 %207
  %v210 = vmul.f32 %v205, %v208
  %212 = vrot.lane.b32.xlu0 %v210, 32
  %v213 = vpop.permute.xlu0 %212
  %v215 = vadd.f32 %v107, %v213
  %v216 = vtanh.pop %v215
  %v217 = vsub.f32 1.0, %v205
  %219 = vrot.lane.b32.xlu0 %v216, 112
  %v220 = vpop.permute.xlu0 %219
  %v222 = vmul.f32 %v217, %v220
  %v223 = vmul.f32 %v205, 0.0
  %v224 = vadd.f32 %v222, %v223
  %v225 = vrot.slane %v196, 2
  %v227 = vadd.f32 %v112, %v225
  %v228 = vxor.u32 %v227, 2147483648
  %v229 = vmul.f32 %v228, 1.442695
  %v230 = vpow.pop %v229
  %v231 = vadd.f32 %v230, 1.0
  %v232 = vrcp.pop %v231
  %v233 = vmul.f32 1.0, %v232
  %234 = vrot.lane.b32.xlu0 %v225, 96
  %v235 = vpop.permute.xlu0 %234
  %v237 = vmul.f32 %v233, %v235
  %239 = vrot.lane.b32.xlu0 %v237, 32
  %v240 = vpop.permute.xlu0 %239
  %v242 = vadd.f32 %v112, %v240
  %v243 = vtanh.pop %v242
  %v244 = vsub.f32 1.0, %v233
  %246 = vrot.lane.b32.xlu0 %v243, 112
  %v247 = vpop.permute.xlu0 %246
  %v249 = vmul.f32 %v244, %v247
  %v250 = vmul.f32 %v233, 0.0
  %v251 = vadd.f32 %v249, %v250
  %253 = vrot.lane.b32.xlu0 %v224, 112
  %v254 = vpop.permute.xlu0 %253
  %v257 = vrot.slane %v251, 6
  %258 = vrot.lane.b32.xlu0 %v257, 80
  %v259 = vpop.permute.xlu0 %258
  %vm261 = vcmask 130048
  %v262 = vsel %vm261, %v254, %v259
  %v264 = vsel %vm33, %v262, 0
  %266 = vmatprep.subr.mxu0 0.0
  %267 = vmatpush1.msra.mxu0 %v115
  %268 = vmatprep.subr.mxu0 0.0
  %269 = vmatpush1.msra.mxu0 %v116
  %270 = vmatprep.subr.mxu0 0.0
  %271 = vmatpush1.msra.mxu0 %v117
  %272 = vmatprep.subr.mxu0 0.0
  %273 = vmatpush1.msra.mxu0 %v118
  %274 = vmatprep.subr.mxu0 0.0
  %275 = vmatpush1.msra.mxu0 0.0
  %276 = vmatprep.subr.mxu0 0.0
  %277 = vmatpush1.msra.mxu0 0.0
  %278 = vmatprep.subr.mxu0 0.0
  %279 = vmatpush1.msra.mxu0 0.0
  %280 = vmatprep.subr.mxu0 0.0
  %281 = vmatpush1.msra.mxu0 0.0
  %282 = vmatprep.subr.mxu0 0.0
  %283 = vmatpush1.msra.mxu0 0.0
  %284 = vmatprep.subr.mxu0 0.0
  %285 = vmatpush1.msra.mxu0 0.0
  %286 = vmatprep.subr.mxu0 0.0
  %287 = vmatpush1.msra.mxu0 0.0
  %288 = vmatprep.subr.mxu0 0.0
  %289 = vmatpush1.msra.mxu0 0.0
  %290 = vmatprep.subr.mxu0 0.0
  %291 = vmatpush1.msra.mxu0 0.0
  %292 = vmatprep.subr.mxu0 0.0
  %293 = vmatpush1.msra.mxu0 0.0
  %294 = vmatprep.subr.mxu0 0.0
  %295 = vmatpush1.msra.mxu0 0.0
  %296 = vmatprep.subr.mxu0 0.0
  %297 = vmatpush1.msra.mxu0 0.0
  %298 = vmatprep.subr.mxu0 0.0
  %299 = vmatpush1.msra.mxu0 0.0
  %300 = vmatprep.subr.mxu0 0.0
  %301 = vmatpush1.msra.mxu0 0.0
  %302 = vmatprep.subr.mxu0 0.0
  %303 = vmatpush1.msra.mxu0 0.0
  %304 = vmatprep.subr.mxu0 0.0
  %305 = vmatpush1.msra.mxu0 0.0
  %306 = vmatprep.subr.mxu0 0.0
  %307 = vmatpush1.msra.mxu0 0.0
  %308 = vmatprep.subr.mxu0 0.0
  %309 = vmatpush1.msra.mxu0 0.0
  %310 = vmatprep.subr.mxu0 0.0
  %311 = vmatpush1.msra.mxu0 0.0
  %312 = vmatprep.subr.mxu0 0.0
  %313 = vmatpush1.msra.mxu0 0.0
  %314 = vmatprep.subr.mxu0 0.0
  %315 = vmatpush1.msra.mxu0 0.0
  %316 = vmatprep.subr.mxu0 0.0
  %317 = vmatpush1.msra.mxu0 0.0
  %318 = vmatprep.subr.mxu0 0.0
  %319 = vmatpush1.msra.mxu0 0.0
  %320 = vmatprep.subr.mxu0 0.0
  %321 = vmatpush1.msra.mxu0 0.0
  %322 = vmatprep.subr.mxu0 0.0
  %323 = vmatpush1.msra.mxu0 0.0
  %324 = vmatprep.subr.mxu0 0.0
  %325 = vmatpush1.msra.mxu0 0.0
  %326 = vmatprep.subr.mxu0 0.0
  %327 = vmatpush1.msra.mxu0 0.0
  %328 = vmatprep.subr.mxu0 0.0
  %329 = vmatpush1.msra.mxu0 0.0
  %330 = vmatprep.mubr.f32.mxu0 0.0
  %331 = vmatmul.mubr.f32.gmra.mrb[0].mxu0 %v264
  %v332 = vpop.f32.mrb[0].mxu0
  %v333 = vadd.f32 %v124, %v332
  %v334 = vpop.f32.mrb[0].mxu0
  %335 = vdwg.mxu0
  %v337 = vrot.slane %v333, 6
  %v339 = vadd.f32 %v107, %v337
  %v340 = vxor.u32 %v339, 2147483648
  %v341 = vmul.f32 %v340, 1.442695
  %v342 = vpow.pop %v341
  %v343 = vadd.f32 %v342, 1.0
  %v344 = vrcp.pop %v343
  %v345 = vmul.f32 1.0, %v344
  %346 = vrot.lane.b32.xlu0 %v337, 96
  %v347 = vpop.permute.xlu0 %346
  %v349 = vmul.f32 %v345, %v347
  %351 = vrot.lane.b32.xlu0 %v349, 32
  %v352 = vpop.permute.xlu0 %351
  %v354 = vadd.f32 %v107, %v352
  %v355 = vtanh.pop %v354
  %v356 = vsub.f32 1.0, %v345
  %358 = vrot.lane.b32.xlu0 %v355, 112
  %v359 = vpop.permute.xlu0 %358
  %v361 = vmul.f32 %v356, %v359
  %v362 = vrot.slane %v262, 6
  %363 = vrot.lane.b32.xlu0 %v362, 16
  %v364 = vpop.permute.xlu0 %363
  %v366 = vmul.f32 %v345, %v364
  %v367 = vadd.f32 %v361, %v366
  %v368 = vrot.slane %v333, 4
  %v370 = vadd.f32 %v112, %v368
  %v371 = vxor.u32 %v370, 2147483648
  %v372 = vmul.f32 %v371, 1.442695
  %v373 = vpow.pop %v372
  %v374 = vadd.f32 %v373, 1.0
  %v375 = vrcp.pop %v374
  %v376 = vmul.f32 1.0, %v375
  %377 = vrot.lane.b32.xlu0 %v368, 96
  %v378 = vpop.permute.xlu0 %377
  %v380 = vmul.f32 %v376, %v378
  %382 = vrot.lane.b32.xlu0 %v380, 32
  %v383 = vpop.permute.xlu0 %382
  %v385 = vadd.f32 %v112, %v383
  %v386 = vtanh.pop %v385
  %v387 = vsub.f32 1.0, %v376
  %389 = vrot.lane.b32.xlu0 %v386, 112
  %v390 = vpop.permute.xlu0 %389
  %v392 = vmul.f32 %v387, %v390
  %v393 = vrot.slane %v262, 4
  %394 = vrot.lane.b32.xlu0 %v393, 48
  %v395 = vpop.permute.xlu0 %394
  %v397 = vmul.f32 %v376, %v395
  %v398 = vadd.f32 %v392, %v397
  %400 = vrot.lane.b32.xlu0 %v367, 112
  %v401 = vpop.permute.xlu0 %400
  %v404 = vrot.slane %v398, 2
  %405 = vrot.lane.b32.xlu0 %v404, 80
  %v406 = vpop.permute.xlu0 %405
  %v408 = vsel %vm261, %v401, %v406
  %v410 = vrot.slane %v408, 2
  %v411 = vsel %vm33, %v410, 0
  %413 = vmatprep.subr.mxu0 0.0
  %414 = vmatpush1.msra.mxu0 %v115
  %415 = vmatprep.subr.mxu0 0.0
  %416 = vmatpush1.msra.mxu0 %v116
  %417 = vmatprep.subr.mxu0 0.0
  %418 = vmatpush1.msra.mxu0 %v117
  %419 = vmatprep.subr.mxu0 0.0
  %420 = vmatpush1.msra.mxu0 %v118
  %421 = vmatprep.subr.mxu0 0.0
  %422 = vmatpush1.msra.mxu0 0.0
  %423 = vmatprep.subr.mxu0 0.0
  %424 = vmatpush1.msra.mxu0 0.0
  %425 = vmatprep.subr.mxu0 0.0
  %426 = vmatpush1.msra.mxu0 0.0
  %427 = vmatprep.subr.mxu0 0.0
  %428 = vmatpush1.msra.mxu0 0.0
  %429 = vmatprep.subr.mxu0 0.0
  %430 = vmatpush1.msra.mxu0 0.0
  %431 = vmatprep.subr.mxu0 0.0
  %432 = vmatpush1.msra.mxu0 0.0
  %433 = vmatprep.subr.mxu0 0.0
  %434 = vmatpush1.msra.mxu0 0.0
  %435 = vmatprep.subr.mxu0 0.0
  %436 = vmatpush1.msra.mxu0 0.0
  %437 = vmatprep.subr.mxu0 0.0
  %438 = vmatpush1.msra.mxu0 0.0
  %439 = vmatprep.subr.mxu0 0.0
  %440 = vmatpush1.msra.mxu0 0.0
  %441 = vmatprep.subr.mxu0 0.0
  %442 = vmatpush1.msra.mxu0 0.0
  %443 = vmatprep.subr.mxu0 0.0
  %444 = vmatpush1.msra.mxu0 0.0
  %445 = vmatprep.subr.mxu0 0.0
  %446 = vmatpush1.msra.mxu0 0.0
  %447 = vmatprep.subr.mxu0 0.0
  %448 = vmatpush1.msra.mxu0 0.0
  %449 = vmatprep.subr.mxu0 0.0
  %450 = vmatpush1.msra.mxu0 0.0
  %451 = vmatprep.subr.mxu0 0.0
  %452 = vmatpush1.msra.mxu0 0.0
  %453 = vmatprep.subr.mxu0 0.0
  %454 = vmatpush1.msra.mxu0 0.0
  %455 = vmatprep.subr.mxu0 0.0
  %456 = vmatpush1.msra.mxu0 0.0
  %457 = vmatprep.subr.mxu0 0.0
  %458 = vmatpush1.msra.mxu0 0.0
  %459 = vmatprep.subr.mxu0 0.0
  %460 = vmatpush1.msra.mxu0 0.0
  %461 = vmatprep.subr.mxu0 0.0
  %462 = vmatpush1.msra.mxu0 0.0
  %463 = vmatprep.subr.mxu0 0.0
  %464 = vmatpush1.msra.mxu0 0.0
  %465 = vmatprep.subr.mxu0 0.0
  %466 = vmatpush1.msra.mxu0 0.0
  %467 = vmatprep.subr.mxu0 0.0
  %468 = vmatpush1.msra.mxu0 0.0
  %469 = vmatprep.subr.mxu0 0.0
  %470 = vmatpush1.msra.mxu0 0.0
  %471 = vmatprep.subr.mxu0 0.0
  %472 = vmatpush1.msra.mxu0 0.0
  %473 = vmatprep.subr.mxu0 0.0
  %474 = vmatpush1.msra.mxu0 0.0
  %475 = vmatprep.subr.mxu0 0.0
  %476 = vmatpush1.msra.mxu0 0.0
  %477 = vmatprep.mubr.f32.mxu0 0.0
  %478 = vmatmul.mubr.f32.gmra.mrb[0].mxu0 %v411
  %v479 = vpop.f32.mrb[0].mxu0
  %v480 = vadd.f32 %v124, %v479
  %v481 = vpop.f32.mrb[0].mxu0
  %482 = vdwg.mxu0
  %v484 = vrot.slane %v480, 4
  %v486 = vadd.f32 %v107, %v484
  %v487 = vxor.u32 %v486, 2147483648
  %v488 = vmul.f32 %v487, 1.442695
  %v489 = vpow.pop %v488
  %v490 = vadd.f32 %v489, 1.0
  %v491 = vrcp.pop %v490
  %v492 = vmul.f32 1.0, %v491
  %493 = vrot.lane.b32.xlu0 %v484, 96
  %v494 = vpop.permute.xlu0 %493
  %v496 = vmul.f32 %v492, %v494
  %498 = vrot.lane.b32.xlu0 %v496, 32
  %v499 = vpop.permute.xlu0 %498
  %v501 = vadd.f32 %v107, %v499
  %v502 = vtanh.pop %v501
  %v503 = vsub.f32 1.0, %v492
  %505 = vrot.lane.b32.xlu0 %v502, 112
  %v506 = vpop.permute.xlu0 %505
  %v508 = vmul.f32 %v503, %v506
  %v509 = vrot.slane %v408, 6
  %510 = vrot.lane.b32.xlu0 %v509, 16
  %v511 = vpop.permute.xlu0 %510
  %v513 = vmul.f32 %v492, %v511
  %v514 = vadd.f32 %v508, %v513
  %v515 = vrot.slane %v480, 6
  %v517 = vadd.f32 %v112, %v515
  %v518 = vxor.u32 %v517, 2147483648
  %v519 = vmul.f32 %v518, 1.442695
  %v520 = vpow.pop %v519
  %v521 = vadd.f32 %v520, 1.0
  %v522 = vrcp.pop %v521
  %v523 = vmul.f32 1.0, %v522
  %524 = vrot.lane.b32.xlu0 %v515, 96
  %v525 = vpop.permute.xlu0 %524
  %v527 = vmul.f32 %v523, %v525
  %529 = vrot.lane.b32.xlu0 %v527, 32
  %v530 = vpop.permute.xlu0 %529
  %v532 = vadd.f32 %v112, %v530
  %v533 = vtanh.pop %v532
  %v534 = vsub.f32 1.0, %v523
  %536 = vrot.lane.b32.xlu0 %v533, 112
  %v537 = vpop.permute.xlu0 %536
  %v539 = vmul.f32 %v534, %v537
  %540 = vrot.lane.b32.xlu0 %v408, 48
  %v541 = vpop.permute.xlu0 %540
  %v543 = vmul.f32 %v523, %v541
  %v544 = vadd.f32 %v539, %v543
  %546 = vrot.lane.b32.xlu0 %v514, 112
  %v547 = vpop.permute.xlu0 %546
  %v550 = vrot.slane %v544, 6
  %551 = vrot.lane.b32.xlu0 %v550, 80
  %v552 = vpop.permute.xlu0 %551
  %v554 = vsel %vm261, %v547, %v552
  %v556 = vrot.slane %v554, 4
  %v557 = vsel %vm33, %v556, 0
  %559 = vmatprep.subr.mxu0 0.0
  %560 = vmatpush1.msra.mxu0 %v115
  %561 = vmatprep.subr.mxu0 0.0
  %562 = vmatpush1.msra.mxu0 %v116
  %563 = vmatprep.subr.mxu0 0.0
  %564 = vmatpush1.msra.mxu0 %v117
  %565 = vmatprep.subr.mxu0 0.0
  %566 = vmatpush1.msra.mxu0 %v118
  %567 = vmatprep.subr.mxu0 0.0
  %568 = vmatpush1.msra.mxu0 0.0
  %569 = vmatprep.subr.mxu0 0.0
  %570 = vmatpush1.msra.mxu0 0.0
  %571 = vmatprep.subr.mxu0 0.0
  %572 = vmatpush1.msra.mxu0 0.0
  %573 = vmatprep.subr.mxu0 0.0
  %574 = vmatpush1.msra.mxu0 0.0
  %575 = vmatprep.subr.mxu0 0.0
  %576 = vmatpush1.msra.mxu0 0.0
  %577 = vmatprep.subr.mxu0 0.0
  %578 = vmatpush1.msra.mxu0 0.0
  %579 = vmatprep.subr.mxu0 0.0
  %580 = vmatpush1.msra.mxu0 0.0
  %581 = vmatprep.subr.mxu0 0.0
  %582 = vmatpush1.msra.mxu0 0.0
  %583 = vmatprep.subr.mxu0 0.0
  %584 = vmatpush1.msra.mxu0 0.0
  %585 = vmatprep.subr.mxu0 0.0
  %586 = vmatpush1.msra.mxu0 0.0
  %587 = vmatprep.subr.mxu0 0.0
  %588 = vmatpush1.msra.mxu0 0.0
  %589 = vmatprep.subr.mxu0 0.0
  %590 = vmatpush1.msra.mxu0 0.0
  %591 = vmatprep.subr.mxu0 0.0
  %592 = vmatpush1.msra.mxu0 0.0
  %593 = vmatprep.subr.mxu0 0.0
  %594 = vmatpush1.msra.mxu0 0.0
  %595 = vmatprep.subr.mxu0 0.0
  %596 = vmatpush1.msra.mxu0 0.0
  %597 = vmatprep.subr.mxu0 0.0
  %598 = vmatpush1.msra.mxu0 0.0
  %599 = vmatprep.subr.mxu0 0.0
  %600 = vmatpush1.msra.mxu0 0.0
  %601 = vmatprep.subr.mxu0 0.0
  %602 = vmatpush1.msra.mxu0 0.0
  %603 = vmatprep.subr.mxu0 0.0
  %604 = vmatpush1.msra.mxu0 0.0
  %605 = vmatprep.subr.mxu0 0.0
  %606 = vmatpush1.msra.mxu0 0.0
  %607 = vmatprep.subr.mxu0 0.0
  %608 = vmatpush1.msra.mxu0 0.0
  %609 = vmatprep.subr.mxu0 0.0
  %610 = vmatpush1.msra.mxu0 0.0
  %611 = vmatprep.subr.mxu0 0.0
  %612 = vmatpush1.msra.mxu0 0.0
  %613 = vmatprep.subr.mxu0 0.0
  %614 = vmatpush1.msra.mxu0 0.0
  %615 = vmatprep.subr.mxu0 0.0
  %616 = vmatpush1.msra.mxu0 0.0
  %617 = vmatprep.subr.mxu0 0.0
  %618 = vmatpush1.msra.mxu0 0.0
  %619 = vmatprep.subr.mxu0 0.0
  %620 = vmatpush1.msra.mxu0 0.0
  %621 = vmatprep.subr.mxu0 0.0
  %622 = vmatpush1.msra.mxu0 0.0
  %623 = vmatprep.mubr.f32.mxu0 0.0
  %624 = vmatmul.mubr.f32.gmra.mrb[0].mxu0 %v557
  %v625 = vpop.f32.mrb[0].mxu0
  %v626 = vadd.f32 %v124, %v625
  %v627 = vpop.f32.mrb[0].mxu0
  %628 = vdwg.mxu0
  %v630 = vrot.slane %v626, 2
  %v632 = vadd.f32 %v107, %v630
  %v633 = vxor.u32 %v632, 2147483648
  %v634 = vmul.f32 %v633, 1.442695
  %v635 = vpow.pop %v634
  %v636 = vadd.f32 %v635, 1.0
  %v637 = vrcp.pop %v636
  %v638 = vmul.f32 1.0, %v637
  %639 = vrot.lane.b32.xlu0 %v630, 96
  %v640 = vpop.permute.xlu0 %639
  %v642 = vmul.f32 %v638, %v640
  %644 = vrot.lane.b32.xlu0 %v642, 32
  %v645 = vpop.permute.xlu0 %644
  %v647 = vadd.f32 %v107, %v645
  %v648 = vtanh.pop %v647
  %v649 = vsub.f32 1.0, %v638
  %651 = vrot.lane.b32.xlu0 %v648, 112
  %v652 = vpop.permute.xlu0 %651
  %v654 = vmul.f32 %v649, %v652
  %v655 = vrot.slane %v554, 6
  %656 = vrot.lane.b32.xlu0 %v655, 16
  %v657 = vpop.permute.xlu0 %656
  %v659 = vmul.f32 %v638, %v657
  %v660 = vadd.f32 %v654, %v659
  %v661 = vadd.f32 %v112, %v626
  %v662 = vxor.u32 %v661, 2147483648
  %v663 = vmul.f32 %v662, 1.442695
  %v664 = vpow.pop %v663
  %v665 = vadd.f32 %v664, 1.0
  %v666 = vrcp.pop %v665
  %v667 = vmul.f32 1.0, %v666
  %668 = vrot.lane.b32.xlu0 %v626, 96
  %v669 = vpop.permute.xlu0 %668
  %v671 = vmul.f32 %v667, %v669
  %673 = vrot.lane.b32.xlu0 %v671, 32
  %v674 = vpop.permute.xlu0 %673
  %v676 = vadd.f32 %v112, %v674
  %v677 = vtanh.pop %v676
  %v678 = vsub.f32 1.0, %v667
  %680 = vrot.lane.b32.xlu0 %v677, 112
  %v681 = vpop.permute.xlu0 %680
  %v683 = vmul.f32 %v678, %v681
  %684 = vrot.lane.b32.xlu0 %v556, 48
  %v685 = vpop.permute.xlu0 %684
  %v687 = vmul.f32 %v667, %v685
  %v688 = vadd.f32 %v683, %v687
  %690 = vrot.lane.b32.xlu0 %v660, 112
  %v691 = vpop.permute.xlu0 %690
  %v694 = vrot.slane %v688, 2
  %695 = vrot.lane.b32.xlu0 %v694, 80
  %v696 = vpop.permute.xlu0 %695
  %v698 = vsel %vm261, %v691, %v696
  %v700 = vrot.slane %v698, 6
  %v701 = vsel %vm33, %v700, 0
  %703 = vmatprep.subr.mxu0 0.0
  %704 = vmatpush1.msra.mxu0 %v115
  %705 = vmatprep.subr.mxu0 0.0
  %706 = vmatpush1.msra.mxu0 %v116
  %707 = vmatprep.subr.mxu0 0.0
  %708 = vmatpush1.msra.mxu0 %v117
  %709 = vmatprep.subr.mxu0 0.0
  %710 = vmatpush1.msra.mxu0 %v118
  %711 = vmatprep.subr.mxu0 0.0
  %712 = vmatpush1.msra.mxu0 0.0
  %713 = vmatprep.subr.mxu0 0.0
  %714 = vmatpush1.msra.mxu0 0.0
  %715 = vmatprep.subr.mxu0 0.0
  %716 = vmatpush1.msra.mxu0 0.0
  %717 = vmatprep.subr.mxu0 0.0
  %718 = vmatpush1.msra.mxu0 0.0
  %719 = vmatprep.subr.mxu0 0.0
  %720 = vmatpush1.msra.mxu0 0.0
  %721 = vmatprep.subr.mxu0 0.0
  %722 = vmatpush1.msra.mxu0 0.0
  %723 = vmatprep.subr.mxu0 0.0
  %724 = vmatpush1.msra.mxu0 0.0
  %725 = vmatprep.subr.mxu0 0.0
  %726 = vmatpush1.msra.mxu0 0.0
  %727 = vmatprep.subr.mxu0 0.0
  %728 = vmatpush1.msra.mxu0 0.0
  %729 = vmatprep.subr.mxu0 0.0
  %730 = vmatpush1.msra.mxu0 0.0
  %731 = vmatprep.subr.mxu0 0.0
  %732 = vmatpush1.msra.mxu0 0.0
  %733 = vmatprep.subr.mxu0 0.0
  %734 = vmatpush1.msra.mxu0 0.0
  %735 = vmatprep.subr.mxu0 0.0
  %736 = vmatpush1.msra.mxu0 0.0
  %737 = vmatprep.subr.mxu0 0.0
  %738 = vmatpush1.msra.mxu0 0.0
  %739 = vmatprep.subr.mxu0 0.0
  %740 = vmatpush1.msra.mxu0 0.0
  %741 = vmatprep.subr.mxu0 0.0
  %742 = vmatpush1.msra.mxu0 0.0
  %743 = vmatprep.subr.mxu0 0.0
  %744 = vmatpush1.msra.mxu0 0.0
  %745 = vmatprep.subr.mxu0 0.0
  %746 = vmatpush1.msra.mxu0 0.0
  %747 = vmatprep.subr.mxu0 0.0
  %748 = vmatpush1.msra.mxu0 0.0
  %749 = vmatprep.subr.mxu0 0.0
  %750 = vmatpush1.msra.mxu0 0.0
  %751 = vmatprep.subr.mxu0 0.0
  %752 = vmatpush1.msra.mxu0 0.0
  %753 = vmatprep.subr.mxu0 0.0
  %754 = vmatpush1.msra.mxu0 0.0
  %755 = vmatprep.subr.mxu0 0.0
  %756 = vmatpush1.msra.mxu0 0.0
  %757 = vmatprep.subr.mxu0 0.0
  %758 = vmatpush1.msra.mxu0 0.0
  %759 = vmatprep.subr.mxu0 0.0
  %760 = vmatpush1.msra.mxu0 0.0
  %761 = vmatprep.subr.mxu0 0.0
  %762 = vmatpush1.msra.mxu0 0.0
  %763 = vmatprep.subr.mxu0 0.0
  %764 = vmatpush1.msra.mxu0 0.0
  %765 = vmatprep.subr.mxu0 0.0
  %766 = vmatpush1.msra.mxu0 0.0
  %767 = vmatprep.mubr.f32.mxu0 0.0
  %768 = vmatmul.mubr.f32.gmra.mrb[0].mxu0 %v701
  %v769 = vpop.f32.mrb[0].mxu0
  %v770 = vadd.f32 %v124, %v769
  %v771 = vpop.f32.mrb[0].mxu0
  %772 = vdwg.mxu0
  %v773 = vadd.f32 %v112, %v770
  %v774 = vxor.u32 %v773, 2147483648
  %v775 = vmul.f32 %v774, 1.442695
  %v776 = vpow.pop %v775
  %v777 = vadd.f32 %v776, 1.0
  %v778 = vrcp.pop %v777
  %v779 = vmul.f32 1.0, %v778
  %781 = vrot.lane.b32.xlu0 %v770, 96
  %v782 = vpop.permute.xlu0 %781
  %v784 = vmul.f32 %v779, %v782
  %786 = vrot.lane.b32.xlu0 %v784, 32
  %v787 = vpop.permute.xlu0 %786
  %v789 = vadd.f32 %v112, %v787
  %v790 = vtanh.pop %v789
  %v791 = vsub.f32 1.0, %v779
  %793 = vrot.lane.b32.xlu0 %v790, 112
  %v794 = vpop.permute.xlu0 %793
  %v796 = vmul.f32 %v791, %v794
  %797 = vrot.lane.b32.xlu0 %v700, 16
  %v798 = vpop.permute.xlu0 %797
  %v800 = vmul.f32 %v779, %v798
  %v801 = vadd.f32 %v796, %v800
  %v802 = vrot.slane %v770, 2
  %v804 = vadd.f32 %v107, %v802
  %v805 = vxor.u32 %v804, 2147483648
  %v806 = vmul.f32 %v805, 1.442695
  %v807 = vpow.pop %v806
  %v808 = vadd.f32 %v807, 1.0
  %v809 = vrcp.pop %v808
  %v810 = vmul.f32 1.0, %v809
  %811 = vrot.lane.b32.xlu0 %v802, 96
  %v812 = vpop.permute.xlu0 %811
  %v814 = vmul.f32 %v810, %v812
  %816 = vrot.lane.b32.xlu0 %v814, 32
  %v817 = vpop.permute.xlu0 %816
  %v819 = vadd.f32 %v107, %v817
  %v820 = vtanh.pop %v819
  %v821 = vsub.f32 1.0, %v810
  %823 = vrot.lane.b32.xlu0 %v820, 112
  %v824 = vpop.permute.xlu0 %823
  %v826 = vmul.f32 %v821, %v824
  %827 = vrot.lane.b32.xlu0 %v698, 48
  %v828 = vpop.permute.xlu0 %827
  %v830 = vmul.f32 %v810, %v828
  %v831 = vadd.f32 %v826, %v830
  %833 = vrot.lane.b32.xlu0 %v801, 112
  %v834 = vpop.permute.xlu0 %833
  %v837 = vrot.slane %v831, 6
  %838 = vrot.lane.b32.xlu0 %v837, 80
  %v839 = vpop.permute.xlu0 %838
  %v841 = vsel %vm261, %v834, %v839
  %v843 = vsel %vm33, %v841, 0
  %845 = vmatprep.subr.mxu0 0.0
  %846 = vmatpush1.msra.mxu0 %v115
  %847 = vmatprep.subr.mxu0 0.0
  %848 = vmatpush1.msra.mxu0 %v116
  %849 = vmatprep.subr.mxu0 0.0
  %850 = vmatpush1.msra.mxu0 %v117
  %851 = vmatprep.subr.mxu0 0.0
  %852 = vmatpush1.msra.mxu0 %v118
  %853 = vmatprep.subr.mxu0 0.0
  %854 = vmatpush1.msra.mxu0 0.0
  %855 = vmatprep.subr.mxu0 0.0
  %856 = vmatpush1.msra.mxu0 0.0
  %857 = vmatprep.subr.mxu0 0.0
  %858 = vmatpush1.msra.mxu0 0.0
  %859 = vmatprep.subr.mxu0 0.0
  %860 = vmatpush1.msra.mxu0 0.0
  %861 = vmatprep.subr.mxu0 0.0
  %862 = vmatpush1.msra.mxu0 0.0
  %863 = vmatprep.subr.mxu0 0.0
  %864 = vmatpush1.msra.mxu0 0.0
  %865 = vmatprep.subr.mxu0 0.0
  %866 = vmatpush1.msra.mxu0 0.0
  %867 = vmatprep.subr.mxu0 0.0
  %868 = vmatpush1.msra.mxu0 0.0
  %869 = vmatprep.subr.mxu0 0.0
  %870 = vmatpush1.msra.mxu0 0.0
  %871 = vmatprep.subr.mxu0 0.0
  %872 = vmatpush1.msra.mxu0 0.0
  %873 = vmatprep.subr.mxu0 0.0
  %874 = vmatpush1.msra.mxu0 0.0
  %875 = vmatprep.subr.mxu0 0.0
  %876 = vmatpush1.msra.mxu0 0.0
  %877 = vmatprep.subr.mxu0 0.0
  %878 = vmatpush1.msra.mxu0 0.0
  %879 = vmatprep.subr.mxu0 0.0
  %880 = vmatpush1.msra.mxu0 0.0
  %881 = vmatprep.subr.mxu0 0.0
  %882 = vmatpush1.msra.mxu0 0.0
  %883 = vmatprep.subr.mxu0 0.0
  %884 = vmatpush1.msra.mxu0 0.0
  %885 = vmatprep.subr.mxu0 0.0
  %886 = vmatpush1.msra.mxu0 0.0
  %887 = vmatprep.subr.mxu0 0.0
  %888 = vmatpush1.msra.mxu0 0.0
  %889 = vmatprep.subr.mxu0 0.0
  %890 = vmatpush1.msra.mxu0 0.0
  %891 = vmatprep.subr.mxu0 0.0
  %892 = vmatpush1.msra.mxu0 0.0
  %893 = vmatprep.subr.mxu0 0.0
  %894 = vmatpush1.msra.mxu0 0.0
  %895 = vmatprep.subr.mxu0 0.0
  %896 = vmatpush1.msra.mxu0 0.0
  %897 = vmatprep.subr.mxu0 0.0
  %898 = vmatpush1.msra.mxu0 0.0
  %899 = vmatprep.subr.mxu0 0.0
  %900 = vmatpush1.msra.mxu0 0.0
  %901 = vmatprep.subr.mxu0 0.0
  %902 = vmatpush1.msra.mxu0 0.0
  %903 = vmatprep.subr.mxu0 0.0
  %904 = vmatpush1.msra.mxu0 0.0
  %905 = vmatprep.subr.mxu0 0.0
  %906 = vmatpush1.msra.mxu0 0.0
  %907 = vmatprep.subr.mxu0 0.0
  %908 = vmatpush1.msra.mxu0 0.0
  %909 = vmatprep.mubr.f32.mxu0 0.0
  %910 = vmatmul.mubr.f32.gmra.mrb[0].mxu0 %v843
  %v911 = vpop.f32.mrb[0].mxu0
  %v912 = vadd.f32 %v124, %v911
  %v913 = vpop.f32.mrb[0].mxu0
  %914 = vdwg.mxu0
  %v916 = vrot.slane %v912, 6
  %v918 = vadd.f32 %v112, %v916
  %v919 = vxor.u32 %v918, 2147483648
  %v920 = vmul.f32 %v919, 1.442695
  %v921 = vpow.pop %v920
  %v922 = vadd.f32 %v921, 1.0
  %v923 = vrcp.pop %v922
  %v924 = vmul.f32 1.0, %v923
  %925 = vrot.lane.b32.xlu0 %v916, 96
  %v926 = vpop.permute.xlu0 %925
  %v928 = vmul.f32 %v924, %v926
  %930 = vrot.lane.b32.xlu0 %v928, 32
  %v931 = vpop.permute.xlu0 %930
  %v933 = vadd.f32 %v112, %v931
  %v934 = vtanh.pop %v933
  %v935 = vsub.f32 1.0, %v924
  %937 = vrot.lane.b32.xlu0 %v934, 112
  %v938 = vpop.permute.xlu0 %937
  %v940 = vmul.f32 %v935, %v938
  %v941 = vrot.slane %v841, 6
  %942 = vrot.lane.b32.xlu0 %v941, 16
  %v943 = vpop.permute.xlu0 %942
  %v945 = vmul.f32 %v924, %v943
  %v946 = vadd.f32 %v940, %v945
  %v947 = vrot.slane %v912, 4
  %v949 = vadd.f32 %v107, %v947
  %v950 = vxor.u32 %v949, 2147483648
  %v951 = vmul.f32 %v950, 1.442695
  %v952 = vpow.pop %v951
  %v953 = vadd.f32 %v952, 1.0
  %v954 = vrcp.pop %v953
  %v955 = vmul.f32 1.0, %v954
  %956 = vrot.lane.b32.xlu0 %v947, 96
  %v957 = vpop.permute.xlu0 %956
  %v959 = vmul.f32 %v955, %v957
  %961 = vrot.lane.b32.xlu0 %v959, 32
  %v962 = vpop.permute.xlu0 %961
  %v964 = vadd.f32 %v107, %v962
  %v965 = vtanh.pop %v964
  %v966 = vsub.f32 1.0, %v955
  %968 = vrot.lane.b32.xlu0 %v965, 112
  %v969 = vpop.permute.xlu0 %968
  %v971 = vmul.f32 %v966, %v969
  %v972 = vrot.slane %v841, 4
  %973 = vrot.lane.b32.xlu0 %v972, 48
  %v974 = vpop.permute.xlu0 %973
  %v976 = vmul.f32 %v955, %v974
  %v977 = vadd.f32 %v971, %v976
  %979 = vrot.lane.b32.xlu0 %v946, 112
  %v980 = vpop.permute.xlu0 %979
  %v983 = vrot.slane %v977, 2
  %984 = vrot.lane.b32.xlu0 %v983, 80
  %v985 = vpop.permute.xlu0 %984
  %v987 = vsel %vm261, %v980, %v985
  %v989 = vrot.slane %v987, 2
  %v990 = vsel %vm33, %v989, 0
  %992 = vmatprep.subr.mxu0 0.0
  %993 = vmatpush1.msra.mxu0 %v115
  %994 = vmatprep.subr.mxu0 0.0
  %995 = vmatpush1.msra.mxu0 %v116
  %996 = vmatprep.subr.mxu0 0.0
  %997 = vmatpush1.msra.mxu0 %v117
  %998 = vmatprep.subr.mxu0 0.0
  %999 = vmatpush1.msra.mxu0 %v118
  %1000 = vmatprep.subr.mxu0 0.0
  %1001 = vmatpush1.msra.mxu0 0.0
  %1002 = vmatprep.subr.mxu0 0.0
  %1003 = vmatpush1.msra.mxu0 0.0
  %1004 = vmatprep.subr.mxu0 0.0
  %1005 = vmatpush1.msra.mxu0 0.0
  %1006 = vmatprep.subr.mxu0 0.0
  %1007 = vmatpush1.msra.mxu0 0.0
  %1008 = vmatprep.subr.mxu0 0.0
  %1009 = vmatpush1.msra.mxu0 0.0
  %1010 = vmatprep.subr.mxu0 0.0
  %1011 = vmatpush1.msra.mxu0 0.0
  %1012 = vmatprep.subr.mxu0 0.0
  %1013 = vmatpush1.msra.mxu0 0.0
  %1014 = vmatprep.subr.mxu0 0.0
  %1015 = vmatpush1.msra.mxu0 0.0
  %1016 = vmatprep.subr.mxu0 0.0
  %1017 = vmatpush1.msra.mxu0 0.0
  %1018 = vmatprep.subr.mxu0 0.0
  %1019 = vmatpush1.msra.mxu0 0.0
  %1020 = vmatprep.subr.mxu0 0.0
  %1021 = vmatpush1.msra.mxu0 0.0
  %1022 = vmatprep.subr.mxu0 0.0
  %1023 = vmatpush1.msra.mxu0 0.0
  %1024 = vmatprep.subr.mxu0 0.0
  %1025 = vmatpush1.msra.mxu0 0.0
  %1026 = vmatprep.subr.mxu0 0.0
  %1027 = vmatpush1.msra.mxu0 0.0
  %1028 = vmatprep.subr.mxu0 0.0
  %1029 = vmatpush1.msra.mxu0 0.0
  %1030 = vmatprep.subr.mxu0 0.0
  %1031 = vmatpush1.msra.mxu0 0.0
  %1032 = vmatprep.subr.mxu0 0.0
  %1033 = vmatpush1.msra.mxu0 0.0
  %1034 = vmatprep.subr.mxu0 0.0
  %1035 = vmatpush1.msra.mxu0 0.0
  %1036 = vmatprep.subr.mxu0 0.0
  %1037 = vmatpush1.msra.mxu0 0.0
  %1038 = vmatprep.subr.mxu0 0.0
  %1039 = vmatpush1.msra.mxu0 0.0
  %1040 = vmatprep.subr.mxu0 0.0
  %1041 = vmatpush1.msra.mxu0 0.0
  %1042 = vmatprep.subr.mxu0 0.0
  %1043 = vmatpush1.msra.mxu0 0.0
  %1044 = vmatprep.subr.mxu0 0.0
  %1045 = vmatpush1.msra.mxu0 0.0
  %1046 = vmatprep.subr.mxu0 0.0
  %1047 = vmatpush1.msra.mxu0 0.0
  %1048 = vmatprep.subr.mxu0 0.0
  %1049 = vmatpush1.msra.mxu0 0.0
  %1050 = vmatprep.subr.mxu0 0.0
  %1051 = vmatpush1.msra.mxu0 0.0
  %1052 = vmatprep.subr.mxu0 0.0
  %1053 = vmatpush1.msra.mxu0 0.0
  %1054 = vmatprep.subr.mxu0 0.0
  %1055 = vmatpush1.msra.mxu0 0.0
  %1056 = vmatprep.mubr.f32.mxu0 0.0
  %1057 = vmatmul.mubr.f32.gmra.mrb[0].mxu0 %v990
  %v1058 = vpop.f32.mrb[0].mxu0
  %v1059 = vadd.f32 %v124, %v1058
  %v1060 = vpop.f32.mrb[0].mxu0
  %1061 = vdwg.mxu0
  %v1063 = vrot.slane %v1059, 4
  %v1065 = vadd.f32 %v112, %v1063
  %v1066 = vxor.u32 %v1065, 2147483648
  %v1067 = vmul.f32 %v1066, 1.442695
  %v1068 = vpow.pop %v1067
  %v1069 = vadd.f32 %v1068, 1.0
  %v1070 = vrcp.pop %v1069
  %v1071 = vmul.f32 1.0, %v1070
  %1072 = vrot.lane.b32.xlu0 %v1063, 96
  %v1073 = vpop.permute.xlu0 %1072
  %v1075 = vmul.f32 %v1071, %v1073
  %1077 = vrot.lane.b32.xlu0 %v1075, 32
  %v1078 = vpop.permute.xlu0 %1077
  %v1080 = vadd.f32 %v112, %v1078
  %v1081 = vtanh.pop %v1080
  %v1082 = vsub.f32 1.0, %v1071
  %1084 = vrot.lane.b32.xlu0 %v1081, 112
  %v1085 = vpop.permute.xlu0 %1084
  %v1087 = vmul.f32 %v1082, %v1085
  %v1088 = vrot.slane %v987, 6
  %1089 = vrot.lane.b32.xlu0 %v1088, 16
  %v1090 = vpop.permute.xlu0 %1089
  %v1092 = vmul.f32 %v1071, %v1090
  %v1093 = vadd.f32 %v1087, %v1092
  %v1094 = vrot.slane %v1059, 6
  %v1096 = vadd.f32 %v107, %v1094
  %v1097 = vxor.u32 %v1096, 2147483648
  %v1098 = vmul.f32 %v1097, 1.442695
  %v1099 = vpow.pop %v1098
  %v1100 = vadd.f32 %v1099, 1.0
  %v1101 = vrcp.pop %v1100
  %v1102 = vmul.f32 1.0, %v1101
  %1103 = vrot.lane.b32.xlu0 %v1094, 96
  %v1104 = vpop.permute.xlu0 %1103
  %v1106 = vmul.f32 %v1102, %v1104
  %1108 = vrot.lane.b32.xlu0 %v1106, 32
  %v1109 = vpop.permute.xlu0 %1108
  %v1111 = vadd.f32 %v107, %v1109
  %v1112 = vtanh.pop %v1111
  %v1113 = vsub.f32 1.0, %v1102
  %1115 = vrot.lane.b32.xlu0 %v1112, 112
  %v1116 = vpop.permute.xlu0 %1115
  %v1118 = vmul.f32 %v1113, %v1116
  %1119 = vrot.lane.b32.xlu0 %v987, 48
  %v1120 = vpop.permute.xlu0 %1119
  %v1122 = vmul.f32 %v1102, %v1120
  %v1123 = vadd.f32 %v1118, %v1122
  %1125 = vrot.lane.b32.xlu0 %v1093, 112
  %v1126 = vpop.permute.xlu0 %1125
  %v1129 = vrot.slane %v1123, 6
  %1130 = vrot.lane.b32.xlu0 %v1129, 80
  %v1131 = vpop.permute.xlu0 %1130
  %v1133 = vsel %vm261, %v1126, %v1131
  %v1135 = vrot.slane %v1133, 4
  %v1136 = vsel %vm33, %v1135, 0
  %1138 = vmatprep.subr.mxu0 0.0
  %1139 = vmatpush1.msra.mxu0 %v115
  %1140 = vmatprep.subr.mxu0 0.0
  %1141 = vmatpush1.msra.mxu0 %v116
  %1142 = vmatprep.subr.mxu0 0.0
  %1143 = vmatpush1.msra.mxu0 %v117
  %1144 = vmatprep.subr.mxu0 0.0
  %1145 = vmatpush1.msra.mxu0 %v118
  %1146 = vmatprep.subr.mxu0 0.0
  %1147 = vmatpush1.msra.mxu0 0.0
  %1148 = vmatprep.subr.mxu0 0.0
  %1149 = vmatpush1.msra.mxu0 0.0
  %1150 = vmatprep.subr.mxu0 0.0
  %1151 = vmatpush1.msra.mxu0 0.0
  %1152 = vmatprep.subr.mxu0 0.0
  %1153 = vmatpush1.msra.mxu0 0.0
  %1154 = vmatprep.subr.mxu0 0.0
  %1155 = vmatpush1.msra.mxu0 0.0
  %1156 = vmatprep.subr.mxu0 0.0
  %1157 = vmatpush1.msra.mxu0 0.0
  %1158 = vmatprep.subr.mxu0 0.0
  %1159 = vmatpush1.msra.mxu0 0.0
  %1160 = vmatprep.subr.mxu0 0.0
  %1161 = vmatpush1.msra.mxu0 0.0
  %1162 = vmatprep.subr.mxu0 0.0
  %1163 = vmatpush1.msra.mxu0 0.0
  %1164 = vmatprep.subr.mxu0 0.0
  %1165 = vmatpush1.msra.mxu0 0.0
  %1166 = vmatprep.subr.mxu0 0.0
  %1167 = vmatpush1.msra.mxu0 0.0
  %1168 = vmatprep.subr.mxu0 0.0
  %1169 = vmatpush1.msra.mxu0 0.0
  %1170 = vmatprep.subr.mxu0 0.0
  %1171 = vmatpush1.msra.mxu0 0.0
  %1172 = vmatprep.subr.mxu0 0.0
  %1173 = vmatpush1.msra.mxu0 0.0
  %1174 = vmatprep.subr.mxu0 0.0
  %1175 = vmatpush1.msra.mxu0 0.0
  %1176 = vmatprep.subr.mxu0 0.0
  %1177 = vmatpush1.msra.mxu0 0.0
  %1178 = vmatprep.subr.mxu0 0.0
  %1179 = vmatpush1.msra.mxu0 0.0
  %1180 = vmatprep.subr.mxu0 0.0
  %1181 = vmatpush1.msra.mxu0 0.0
  %1182 = vmatprep.subr.mxu0 0.0
  %1183 = vmatpush1.msra.mxu0 0.0
  %1184 = vmatprep.subr.mxu0 0.0
  %1185 = vmatpush1.msra.mxu0 0.0
  %1186 = vmatprep.subr.mxu0 0.0
  %1187 = vmatpush1.msra.mxu0 0.0
  %1188 = vmatprep.subr.mxu0 0.0
  %1189 = vmatpush1.msra.mxu0 0.0
  %1190 = vmatprep.subr.mxu0 0.0
  %1191 = vmatpush1.msra.mxu0 0.0
  %1192 = vmatprep.subr.mxu0 0.0
  %1193 = vmatpush1.msra.mxu0 0.0
  %1194 = vmatprep.subr.mxu0 0.0
  %1195 = vmatpush1.msra.mxu0 0.0
  %1196 = vmatprep.subr.mxu0 0.0
  %1197 = vmatpush1.msra.mxu0 0.0
  %1198 = vmatprep.subr.mxu0 0.0
  %1199 = vmatpush1.msra.mxu0 0.0
  %1200 = vmatprep.subr.mxu0 0.0
  %1201 = vmatpush1.msra.mxu0 0.0
  %1202 = vmatprep.mubr.f32.mxu0 0.0
  %1203 = vmatmul.mubr.f32.gmra.mrb[0].mxu0 %v1136
  %v1204 = vpop.f32.mrb[0].mxu0
  %v1205 = vadd.f32 %v124, %v1204
  %v1206 = vpop.f32.mrb[0].mxu0
  %1207 = vdwg.mxu0
  %v1209 = vrot.slane %v1205, 2
  %v1211 = vadd.f32 %v112, %v1209
  %v1212 = vxor.u32 %v1211, 2147483648
  %v1213 = vmul.f32 %v1212, 1.442695
  %v1214 = vpow.pop %v1213
  %v1215 = vadd.f32 %v1214, 1.0
  %v1216 = vrcp.pop %v1215
  %v1217 = vmul.f32 1.0, %v1216
  %1218 = vrot.lane.b32.xlu0 %v1209, 96
  %v1219 = vpop.permute.xlu0 %1218
  %v1221 = vmul.f32 %v1217, %v1219
  %1223 = vrot.lane.b32.xlu0 %v1221, 32
  %v1224 = vpop.permute.xlu0 %1223
  %v1226 = vadd.f32 %v112, %v1224
  %v1227 = vtanh.pop %v1226
  %v1228 = vsub.f32 1.0, %v1217
  %1230 = vrot.lane.b32.xlu0 %v1227, 112
  %v1231 = vpop.permute.xlu0 %1230
  %v1233 = vmul.f32 %v1228, %v1231
  %v1234 = vrot.slane %v1133, 6
  %1235 = vrot.lane.b32.xlu0 %v1234, 16
  %v1236 = vpop.permute.xlu0 %1235
  %v1238 = vmul.f32 %v1217, %v1236
  %v1239 = vadd.f32 %v1233, %v1238
  %v1240 = vadd.f32 %v107, %v1205
  %v1241 = vxor.u32 %v1240, 2147483648
  %v1242 = vmul.f32 %v1241, 1.442695
  %v1243 = vpow.pop %v1242
  %v1244 = vadd.f32 %v1243, 1.0
  %v1245 = vrcp.pop %v1244
  %v1246 = vmul.f32 1.0, %v1245
  %1247 = vrot.lane.b32.xlu0 %v1205, 96
  %v1248 = vpop.permute.xlu0 %1247
  %v1250 = vmul.f32 %v1246, %v1248
  %1252 = vrot.lane.b32.xlu0 %v1250, 32
  %v1253 = vpop.permute.xlu0 %1252
  %v1255 = vadd.f32 %v107, %v1253
  %v1256 = vtanh.pop %v1255
  %v1257 = vsub.f32 1.0, %v1246
  %1259 = vrot.lane.b32.xlu0 %v1256, 112
  %v1260 = vpop.permute.xlu0 %1259
  %v1262 = vmul.f32 %v1257, %v1260
  %1263 = vrot.lane.b32.xlu0 %v1135, 48
  %v1264 = vpop.permute.xlu0 %1263
  %v1266 = vmul.f32 %v1246, %v1264
  %v1267 = vadd.f32 %v1262, %v1266
  %1269 = vrot.lane.b32.xlu0 %v1267, 80
  %v1270 = vpop.permute.xlu0 %1269
  %v1272 = vsel %vm261, %v254, %v1270
  %1273 = vrot.lane.b32.xlu0 %v1123, 80
  %v1274 = vpop.permute.xlu0 %1273
  %v1276 = vsel %vm261, %v401, %v1274
  %1277 = vrot.lane.b32.xlu0 %v977, 80
  %v1278 = vpop.permute.xlu0 %1277
  %v1280 = vsel %vm261, %v547, %v1278
  %1281 = vrot.lane.b32.xlu0 %v831, 80
  %v1282 = vpop.permute.xlu0 %1281
  %v1284 = vsel %vm261, %v691, %v1282
  %1285 = vrot.lane.b32.xlu0 %v688, 80
  %v1286 = vpop.permute.xlu0 %1285
  %v1288 = vsel %vm261, %v834, %v1286
  %1289 = vrot.lane.b32.xlu0 %v544, 80
  %v1290 = vpop.permute.xlu0 %1289
  %v1292 = vsel %vm261, %v980, %v1290
  %1293 = vrot.lane.b32.xlu0 %v398, 80
  %v1294 = vpop.permute.xlu0 %1293
  %v1296 = vsel %vm261, %v1126, %v1294
  %1298 = vrot.lane.b32.xlu0 %v1239, 112
  %v1299 = vpop.permute.xlu0 %1298
  %1301 = vrot.lane.b32.xlu0 %v251, 80
  %v1302 = vpop.permute.xlu0 %1301
  %v1304 = vsel %vm261, %v1299, %v1302
  %v1306 = vrot.slane %v1276, 2
  %v1309 = vrot.slane %v1280, 4
  %v1312 = vrot.slane %v1284, 6
  %v1315 = vrot.slane %v1292, 2
  %v1318 = vrot.slane %v1296, 4
  %v1321 = vrot.slane %v1304, 6
  %vm1323 = vcmask 254976
  %1324 = vst.msk [vmem:[%s5] sm:$0x3] %vm1323, %v1272
  %1325 = vst.msk [vmem:[%s5 + $0x2] sm:$0x3] %vm1323, %v1306
  %1326 = vst.msk [vmem:[%s5 + $0x4] sm:$0x3] %vm1323, %v1309
  %1327 = vst.msk [vmem:[%s5 + $0x6] sm:$0x3] %vm1323, %v1312
  %1328 = vst.msk [vmem:[%s5 + $0x8] sm:$0x3] %vm1323, %v1288
  %1329 = vst.msk [vmem:[%s5 + $0xa] sm:$0x3] %vm1323, %v1315
  %1330 = vst.msk [vmem:[%s5 + $0xc] sm:$0x3] %vm1323, %v1318
  %1331 = vst.msk [vmem:[%s5 + $0xe] sm:$0x3] %vm1323, %v1321
  // Predicated region
  $region22: #{feature_encoder_forward.4} parent=0 // pred_check
    _
  $region23: #{feature_encoder_forward.4} parent=0 // pred_check_branch
    %1333 = sbr.rel (0) target = $region25
  $region24: #{feature_encoder_forward.4} parent=0 // pred_region
    _
  $region25: #{feature_encoder_forward.4} parent=0 // pred_fallthru
    _
  // Predicated region
  $region26: #{feature_encoder_forward.4} parent=0 // pred_check
    _
  $region27: #{feature_encoder_forward.4} parent=0 // pred_check_branch
    %1335 = sbr.rel (0) target = $region29
  $region28: #{feature_encoder_forward.4} parent=0 // pred_region
    _
  $region29: #{feature_encoder_forward.4} parent=0 // pred_fallthru
    _

</llo_original>
